<compile_context>
chip_gen: v6e
topology: v6e:2x2x1
jax: 0.10.0
libtpu: 0.0.40
codegen_flags: <defaults>
</compile_context>

<pallas_src>
import functools

import jax
import jax.numpy as jnp
from jax.experimental import pallas as pl
from jax.experimental.pallas import tpu as pltpu

EMBED_DIM = 100
VOCAB_SIZE = 13326
HIDDEN = 128
D_EMB = 18 * EMBED_DIM          # 1800
D_PAD = 1920                    # 15 * 128 lanes, 120 * 16 bf16 sublanes


def mil_rc_kernel(x_ref, w1_ref, b1_ref, w2_ref, b2_ref, w3_ref, b3_ref,
                  wo_ref, bo_ref, out_ref, *, bags_per_step, inst_per_bag):
    # fc1: single bf16 MXU matmul on the padded slab, f32 accumulation.
    h1 = jnp.dot(x_ref[...], w1_ref[...], preferred_element_type=jnp.float32)
    h1 = jnp.maximum(h1 + b1_ref[...], 0.0)                     # (M, 128) f32
    rc1 = jnp.max(h1.reshape(bags_per_step, inst_per_bag, HIDDEN), axis=1)

    # fc2 + ReLU (dropout == identity)
    h2 = jnp.dot(h1.astype(jnp.bfloat16), w2_ref[...],
                 preferred_element_type=jnp.float32)
    h2 = jnp.maximum(h2 + b2_ref[...], 0.0)                     # (M, 128)
    rc2 = jnp.max(h2.reshape(bags_per_step, inst_per_bag, HIDDEN), axis=1)

    # fc3 + ReLU
    h3 = jnp.dot(h2.astype(jnp.bfloat16), w3_ref[...],
                 preferred_element_type=jnp.float32)
    h3 = jnp.maximum(h3 + b3_ref[...], 0.0)                     # (M, 128)
    rc3 = jnp.max(h3.reshape(bags_per_step, inst_per_bag, HIDDEN), axis=1)

    rc_sum = rc1 + rc2 + rc3                                    # (bps, 128)

    # out Linear(128, 1) in f32: elementwise mul + lane reduce, then broadcast
    # the per-bag scalar across 128 lanes so the store stays unmasked.
    logit = jnp.sum(rc_sum * wo_ref[...], axis=-1, keepdims=True)   # (bps, 1)
    logit = logit + bo_ref[...]                                     # (bps, 128)
    out_ref[...] = jax.nn.sigmoid(logit)


def _bags_per_step(num_bags, inst_per_bag, target_rows=256):
    """Pick bags/step so M = bags*B ~ target_rows, sublane-aligned blocks."""
    bps = max(1, target_rows // inst_per_bag)
    if bps >= num_bags:
        return num_bags            # single step; block == full array is legal
    return max(8, (bps // 8) * 8)  # multi-step: keep (bps,128) block aligned


def _build_slab(x_int, embed_bf16):
    """(NB, B, n_feat+19) int -> (NB*B, D_PAD) bf16 slab [emb | feats | 0]."""
    num_bags, B, n_cols = x_int.shape
    n_feat = n_cols - 19
    assert n_feat <= D_PAD - D_EMB, "too many numeric features to fold"
    token_ids = x_int[..., -19:-1]                               # (NB, B, 18)
    emb = jnp.take(embed_bf16, token_ids, axis=0)                # bf16 gather
    emb = emb.reshape(num_bags * B, D_EMB)
    feats = x_int[..., :n_feat].reshape(num_bags * B, n_feat)
    feats = feats.astype(jnp.bfloat16)        # small ints -> exact in bf16
    pad = jnp.zeros((num_bags * B, D_PAD - D_EMB - n_feat), jnp.bfloat16)
    return jnp.concatenate([emb, feats, pad], axis=-1)


def mil_rc_forward(x_int, params, target_rows=256):
    """x_int: (num_bags, B, n_feat + 19) int32 raw input.

    Columns per row: [numeric features | 18 token ids | label].
    Returns (num_bags, 1) float32 sigmoid outputs.
    """
    num_bags, B, n_cols = x_int.shape
    assert B % 8 == 0, "instances per bag must be a multiple of 8"

    bps = _bags_per_step(num_bags, B, target_rows)
    num_steps = -(-num_bags // bps)
    nb_pad = num_steps * bps
    if nb_pad != num_bags:
        # Pad with all-zero bags (token id 0 == padding_idx -> zero embedding);
        # padded outputs are sliced off below.
        pad = jnp.zeros((nb_pad - num_bags, B, n_cols), x_int.dtype)
        x_int = jnp.concatenate([x_int, pad], axis=0)

    x_slab = _build_slab(x_int, params["embed"])          # (nb_pad*B, D_PAD)
    M = bps * B

    const2 = lambda g: (0, 0)
    in_specs = [
        pl.BlockSpec((M, D_PAD), lambda g: (g, 0)),       # input slab (per step)
        pl.BlockSpec((D_PAD, HIDDEN), const2),            # w1 (resident)
        pl.BlockSpec((1, HIDDEN), const2),                # b1
        pl.BlockSpec((HIDDEN, HIDDEN), const2),           # w2
        pl.BlockSpec((1, HIDDEN), const2),                # b2
        pl.BlockSpec((HIDDEN, HIDDEN), const2),           # w3
        pl.BlockSpec((1, HIDDEN), const2),                # b3
        pl.BlockSpec((1, HIDDEN), const2),                # wo (transposed row)
        pl.BlockSpec((1, HIDDEN), const2),                # bo (lane broadcast)
    ]
    out_specs = pl.BlockSpec((bps, HIDDEN), lambda g: (g, 0))

    # Advisory cost estimate so XLA can overlap the gather glue with the call.
    flops = 2 * nb_pad * B * (D_PAD + 2 * HIDDEN) * HIDDEN + 4 * nb_pad * HIDDEN
    bytes_accessed = (x_slab.size * 2
                      + params["w1_pad"].size * 2
                      + 2 * HIDDEN * HIDDEN * 2
                      + 5 * HIDDEN * 4
                      + nb_pad * HIDDEN * 4)
    cost = pl.CostEstimate(flops=int(flops),
                           transcendentals=int(nb_pad * HIDDEN),
                           bytes_accessed=int(bytes_accessed))

    kernel = functools.partial(mil_rc_kernel,
                               bags_per_step=bps, inst_per_bag=B)
    out = pl.pallas_call(
        kernel,
        out_shape=jax.ShapeDtypeStruct((nb_pad, HIDDEN), jnp.float32),
        grid=(num_steps,),
        in_specs=in_specs,
        out_specs=out_specs,
        compiler_params=pltpu.CompilerParams(
            dimension_semantics=("parallel",)),
        cost_estimate=cost,
    )(x_slab, params["w1_pad"], params["b1"],
      params["w2"], params["b2"],
      params["w3"], params["b3"],
      params["wo_t"], params["bo"])

    return out[:num_bags, :1]                                     # (NB, 1)


def mil_rc_reference(x_int, params):
    """Plain-JAX reference with identical dtypes (sanity check)."""
    num_bags, B, _ = x_int.shape
    x_slab = _build_slab(x_int, params["embed"])
    h1 = jnp.maximum(
        jnp.dot(x_slab, params["w1_pad"],
                preferred_element_type=jnp.float32) + params["b1"], 0.0)
    rc1 = jnp.max(h1.reshape(num_bags, B, HIDDEN), axis=1)
    h2 = jnp.maximum(
        jnp.dot(h1.astype(jnp.bfloat16), params["w2"],
                preferred_element_type=jnp.float32) + params["b2"], 0.0)
    rc2 = jnp.max(h2.reshape(num_bags, B, HIDDEN), axis=1)
    h3 = jnp.maximum(
        jnp.dot(h2.astype(jnp.bfloat16), params["w3"],
                preferred_element_type=jnp.float32) + params["b3"], 0.0)
    rc3 = jnp.max(h3.reshape(num_bags, B, HIDDEN), axis=1)
    rc_sum = rc1 + rc2 + rc3
    logit = (jnp.sum(rc_sum * params["wo_t"], axis=-1, keepdims=True)
             + params["bo"][:, :1])
    return jax.nn.sigmoid(logit)                                  # (NB, 1)


def init_params(key, n_feat):
    input_size = n_feat + D_EMB
    ks = jax.random.split(key, 9)

    def linear(kw, kb, fan_in, fan_out):
        bound = 1.0 / jnp.sqrt(float(fan_in))
        w = jax.random.uniform(kw, (fan_in, fan_out), jnp.float32, -bound, bound)
        b = jax.random.uniform(kb, (1, fan_out), jnp.float32, -bound, bound)
        return w, b

    embed = jax.random.normal(ks[0], (VOCAB_SIZE, EMBED_DIM), jnp.float32)
    embed = embed.at[0].set(0.0)                                  # padding_idx=0
    embed = embed.astype(jnp.bfloat16)          # bf16 table -> cheaper gather

    w1, b1 = linear(ks[1], ks[2], input_size, HIDDEN)
    w2, b2 = linear(ks[3], ks[4], HIDDEN, HIDDEN)
    w3, b3 = linear(ks[5], ks[6], HIDDEN, HIDDEN)
    wo, bo = linear(ks[7], ks[8], HIDDEN, 1)

    # Repack/zero-pad W1 to match the slab column order [emb | feats | 0].
    w1_pad = jnp.zeros((D_PAD, HIDDEN), jnp.float32)
    w1_pad = w1_pad.at[:D_EMB].set(w1[n_feat:])                   # emb rows
    w1_pad = w1_pad.at[D_EMB:D_EMB + n_feat].set(w1[:n_feat])     # feat rows
    w1_pad = w1_pad.astype(jnp.bfloat16)

    return dict(
        embed=embed,                                              # bf16 table
        w1_pad=w1_pad,                                            # (1920,128) bf16
        b1=b1,
        w2=w2.astype(jnp.bfloat16), b2=b2,
        w3=w3.astype(jnp.bfloat16), b3=b3,
        wo_t=wo.T,                                                # (1,128) f32
        bo=jnp.full((1, HIDDEN), bo[0, 0], jnp.float32),          # lane-bcast bias
    )


if __name__ == "__main__":
    key = jax.random.PRNGKey(0)
    k_in, k_tok, k_par = jax.random.split(key, 3)

    NUM_BAGS = 4     # bags processed in one pallas_call
    B = 8            # instances per bag
    N_FEAT = 8       # numeric feature columns

    # raw input per instance: [features (int-valued) | 18 token ids | label]
    feats = jax.random.randint(k_in, (NUM_BAGS, B, N_FEAT), 0, 10, dtype=jnp.int32)
    toks = jax.random.randint(k_tok, (NUM_BAGS, B, 18), 0, VOCAB_SIZE, dtype=jnp.int32)
    label = jnp.zeros((NUM_BAGS, B, 1), dtype=jnp.int32)
    x_int = jnp.concatenate([feats, toks, label], axis=-1)        # (4, 8, 27)

    params = init_params(k_par, N_FEAT)

    out = mil_rc_forward(x_int, params)
    out = jax.block_until_ready(out)

    assert out.shape == (NUM_BAGS, 1)
    assert bool(jnp.all((out >= 0.0) & (out <= 1.0)))

    ref = jax.block_until_ready(mil_rc_reference(x_int, params))
    max_diff = float(jnp.max(jnp.abs(out - ref)))
    assert max_diff < 1e-2, f"kernel vs reference mismatch: {max_diff}"

    print("KERNEL_OK")
</pallas_src>

<mosaic_0001>
module attributes {stable_mosaic.version = 11 : i64} {
  func.func @mil_rc_kernel(%arg0: i32, %arg1: memref<32x1920xbf16, #tpu.memory_space<vmem>>, %arg2: memref<1920x128xbf16, #tpu.memory_space<vmem>>, %arg3: memref<1x128xf32, #tpu.memory_space<vmem>>, %arg4: memref<128x128xbf16, #tpu.memory_space<vmem>>, %arg5: memref<1x128xf32, #tpu.memory_space<vmem>>, %arg6: memref<128x128xbf16, #tpu.memory_space<vmem>>, %arg7: memref<1x128xf32, #tpu.memory_space<vmem>>, %arg8: memref<1x128xf32, #tpu.memory_space<vmem>>, %arg9: memref<1x128xf32, #tpu.memory_space<vmem>>, %arg10: memref<4x128xf32, #tpu.memory_space<vmem>>) attributes {dimension_semantics = [#tpu.dimension_semantics<parallel>], iteration_bounds = array<i64: 1>, scalar_prefetch = 0 : i64, scratch_operands = 0 : i64, tpu.core_type = #tpu.core_type<tc>, window_params = [{transform_indices = @transform_0, window_bounds = array<i64: 32, 1920>}, {pipeline_mode = #tpu.pipeline_mode<synchronous>, transform_indices = @transform_1, window_bounds = array<i64: 1920, 128>}, {pipeline_mode = #tpu.pipeline_mode<synchronous>, transform_indices = @transform_2, window_bounds = array<i64: 1, 128>}, {pipeline_mode = #tpu.pipeline_mode<synchronous>, transform_indices = @transform_3, window_bounds = array<i64: 128, 128>}, {pipeline_mode = #tpu.pipeline_mode<synchronous>, transform_indices = @transform_4, window_bounds = array<i64: 1, 128>}, {pipeline_mode = #tpu.pipeline_mode<synchronous>, transform_indices = @transform_5, window_bounds = array<i64: 128, 128>}, {pipeline_mode = #tpu.pipeline_mode<synchronous>, transform_indices = @transform_6, window_bounds = array<i64: 1, 128>}, {pipeline_mode = #tpu.pipeline_mode<synchronous>, transform_indices = @transform_7, window_bounds = array<i64: 1, 128>}, {pipeline_mode = #tpu.pipeline_mode<synchronous>, transform_indices = @transform_8, window_bounds = array<i64: 1, 128>}, {transform_indices = @transform_9, window_bounds = array<i64: 4, 128>}]} {
    %c0 = arith.constant 0 : index
    %c0_0 = arith.constant 0 : index
    %0 = vector.load %arg1[%c0, %c0_0] : memref<32x1920xbf16, #tpu.memory_space<vmem>>, vector<32x1920xbf16>
    %c0_1 = arith.constant 0 : index
    %c0_2 = arith.constant 0 : index
    %1 = vector.load %arg2[%c0_1, %c0_2] : memref<1920x128xbf16, #tpu.memory_space<vmem>>, vector<1920x128xbf16>
    %cst = arith.constant dense<0.000000e+00> : vector<32x128xf32>
    %2 = tpu.matmul %0, %1, %cst {dimension_numbers = #tpu.dot_dimension_numbers<[1], [0], [0], [1], [0, 0, 1, 1], [], []>} : vector<32x1920xbf16>, vector<1920x128xbf16>, vector<32x128xf32> -> vector<32x128xf32>
    %c0_3 = arith.constant 0 : index
    %c0_4 = arith.constant 0 : index
    %3 = vector.load %arg3[%c0_3, %c0_4] : memref<1x128xf32, #tpu.memory_space<vmem>>, vector<1x128xf32>
    %4 = vector.broadcast %3 : vector<1x128xf32> to vector<32x128xf32>
    %5 = arith.addf %2, %4 : vector<32x128xf32>
    %cst_5 = arith.constant 0.000000e+00 : f32
    %6 = vector.broadcast %cst_5 : f32 to vector<32x128xf32>
    %7 = arith.maximumf %5, %6 : vector<32x128xf32>
    %8 = vector.shape_cast %7 : vector<32x128xf32> to vector<4x8x128xf32>
    %cst_6 = arith.constant dense<0xFF800000> : vector<4x128xf32>
    %9 = vector.multi_reduction <maximumf>, %8, %cst_6 [1] : vector<4x8x128xf32> to vector<4x128xf32>
    %10 = arith.truncf %7 : vector<32x128xf32> to vector<32x128xbf16>
    %c0_7 = arith.constant 0 : index
    %c0_8 = arith.constant 0 : index
    %11 = vector.load %arg4[%c0_7, %c0_8] : memref<128x128xbf16, #tpu.memory_space<vmem>>, vector<128x128xbf16>
    %cst_9 = arith.constant dense<0.000000e+00> : vector<32x128xf32>
    %12 = tpu.matmul %10, %11, %cst_9 {dimension_numbers = #tpu.dot_dimension_numbers<[1], [0], [0], [1], [0, 0, 1, 1], [], []>} : vector<32x128xbf16>, vector<128x128xbf16>, vector<32x128xf32> -> vector<32x128xf32>
    %c0_10 = arith.constant 0 : index
    %c0_11 = arith.constant 0 : index
    %13 = vector.load %arg5[%c0_10, %c0_11] : memref<1x128xf32, #tpu.memory_space<vmem>>, vector<1x128xf32>
    %14 = vector.broadcast %13 : vector<1x128xf32> to vector<32x128xf32>
    %15 = arith.addf %12, %14 : vector<32x128xf32>
    %cst_12 = arith.constant 0.000000e+00 : f32
    %16 = vector.broadcast %cst_12 : f32 to vector<32x128xf32>
    %17 = arith.maximumf %15, %16 : vector<32x128xf32>
    %18 = vector.shape_cast %17 : vector<32x128xf32> to vector<4x8x128xf32>
    %cst_13 = arith.constant dense<0xFF800000> : vector<4x128xf32>
    %19 = vector.multi_reduction <maximumf>, %18, %cst_13 [1] : vector<4x8x128xf32> to vector<4x128xf32>
    %20 = arith.truncf %17 : vector<32x128xf32> to vector<32x128xbf16>
    %c0_14 = arith.constant 0 : index
    %c0_15 = arith.constant 0 : index
    %21 = vector.load %arg6[%c0_14, %c0_15] : memref<128x128xbf16, #tpu.memory_space<vmem>>, vector<128x128xbf16>
    %cst_16 = arith.constant dense<0.000000e+00> : vector<32x128xf32>
    %22 = tpu.matmul %20, %21, %cst_16 {dimension_numbers = #tpu.dot_dimension_numbers<[1], [0], [0], [1], [0, 0, 1, 1], [], []>} : vector<32x128xbf16>, vector<128x128xbf16>, vector<32x128xf32> -> vector<32x128xf32>
    %c0_17 = arith.constant 0 : index
    %c0_18 = arith.constant 0 : index
    %23 = vector.load %arg7[%c0_17, %c0_18] : memref<1x128xf32, #tpu.memory_space<vmem>>, vector<1x128xf32>
    %24 = vector.broadcast %23 : vector<1x128xf32> to vector<32x128xf32>
    %25 = arith.addf %22, %24 : vector<32x128xf32>
    %cst_19 = arith.constant 0.000000e+00 : f32
    %26 = vector.broadcast %cst_19 : f32 to vector<32x128xf32>
    %27 = arith.maximumf %25, %26 : vector<32x128xf32>
    %28 = vector.shape_cast %27 : vector<32x128xf32> to vector<4x8x128xf32>
    %cst_20 = arith.constant dense<0xFF800000> : vector<4x128xf32>
    %29 = vector.multi_reduction <maximumf>, %28, %cst_20 [1] : vector<4x8x128xf32> to vector<4x128xf32>
    %30 = arith.addf %9, %19 : vector<4x128xf32>
    %31 = arith.addf %30, %29 : vector<4x128xf32>
    %c0_21 = arith.constant 0 : index
    %c0_22 = arith.constant 0 : index
    %32 = vector.load %arg8[%c0_21, %c0_22] : memref<1x128xf32, #tpu.memory_space<vmem>>, vector<1x128xf32>
    %33 = vector.broadcast %32 : vector<1x128xf32> to vector<4x128xf32>
    %34 = arith.mulf %31, %33 : vector<4x128xf32>
    %cst_23 = arith.constant dense<0.000000e+00> : vector<4xf32>
    %35 = vector.multi_reduction <add>, %34, %cst_23 [1] : vector<4x128xf32> to vector<4xf32>
    %36 = vector.shape_cast %35 : vector<4xf32> to vector<4x1xf32>
    %c0_24 = arith.constant 0 : index
    %c0_25 = arith.constant 0 : index
    %37 = vector.load %arg9[%c0_24, %c0_25] : memref<1x128xf32, #tpu.memory_space<vmem>>, vector<1x128xf32>
    %38 = vector.broadcast %36 : vector<4x1xf32> to vector<4x128xf32>
    %39 = vector.broadcast %37 : vector<1x128xf32> to vector<4x128xf32>
    %40 = arith.addf %38, %39 : vector<4x128xf32>
    %41 = arith.negf %40 : vector<4x128xf32>
    %42 = math.exp %41 : vector<4x128xf32>
    %cst_26 = arith.constant 1.000000e+00 : f32
    %43 = vector.broadcast %cst_26 : f32 to vector<4x128xf32>
    %44 = arith.addf %43, %42 : vector<4x128xf32>
    %45 = arith.divf %43, %44 : vector<4x128xf32>
    %c0_27 = arith.constant 0 : index
    %c0_28 = arith.constant 0 : index
    %46 = vector.load %arg10[%c0_27, %c0_28] : memref<4x128xf32, #tpu.memory_space<vmem>>, vector<4x128xf32>
    tpu.vector_store %arg10[%c0_27, %c0_28], %45 {strides = array<i32>} : memref<4x128xf32, #tpu.memory_space<vmem>>, vector<4x128xf32>,
    return
  }
  func.func @transform_0(%arg0: i32) -> (i32, i32) {
    %c0_i32 = arith.constant 0 : i32
    %c0_i32_0 = arith.constant 0 : i32
    return %arg0, %c0_i32 : i32, i32
  }
  func.func @transform_1(%arg0: i32) -> (i32, i32) {
    %c0_i32 = arith.constant 0 : i32
    %c0_i32_0 = arith.constant 0 : i32
    %c0_i32_1 = arith.constant 0 : i32
    return %c0_i32, %c0_i32_0 : i32, i32
  }
  func.func @transform_2(%arg0: i32) -> (i32, i32) {
    %c0_i32 = arith.constant 0 : i32
    %c0_i32_0 = arith.constant 0 : i32
    %c0_i32_1 = arith.constant 0 : i32
    return %c0_i32, %c0_i32_0 : i32, i32
  }
  func.func @transform_3(%arg0: i32) -> (i32, i32) {
    %c0_i32 = arith.constant 0 : i32
    %c0_i32_0 = arith.constant 0 : i32
    %c0_i32_1 = arith.constant 0 : i32
    return %c0_i32, %c0_i32_0 : i32, i32
  }
  func.func @transform_4(%arg0: i32) -> (i32, i32) {
    %c0_i32 = arith.constant 0 : i32
    %c0_i32_0 = arith.constant 0 : i32
    %c0_i32_1 = arith.constant 0 : i32
    return %c0_i32, %c0_i32_0 : i32, i32
  }
  func.func @transform_5(%arg0: i32) -> (i32, i32) {
    %c0_i32 = arith.constant 0 : i32
    %c0_i32_0 = arith.constant 0 : i32
    %c0_i32_1 = arith.constant 0 : i32
    return %c0_i32, %c0_i32_0 : i32, i32
  }
  func.func @transform_6(%arg0: i32) -> (i32, i32) {
    %c0_i32 = arith.constant 0 : i32
    %c0_i32_0 = arith.constant 0 : i32
    %c0_i32_1 = arith.constant 0 : i32
    return %c0_i32, %c0_i32_0 : i32, i32
  }
  func.func @transform_7(%arg0: i32) -> (i32, i32) {
    %c0_i32 = arith.constant 0 : i32
    %c0_i32_0 = arith.constant 0 : i32
    %c0_i32_1 = arith.constant 0 : i32
    return %c0_i32, %c0_i32_0 : i32, i32
  }
  func.func @transform_8(%arg0: i32) -> (i32, i32) {
    %c0_i32 = arith.constant 0 : i32
    %c0_i32_0 = arith.constant 0 : i32
    %c0_i32_1 = arith.constant 0 : i32
    return %c0_i32, %c0_i32_0 : i32, i32
  }
  func.func @transform_9(%arg0: i32) -> (i32, i32) {
    %c0_i32 = arith.constant 0 : i32
    %c0_i32_0 = arith.constant 0 : i32
    return %arg0, %c0_i32 : i32, i32
  }
}

</mosaic_0001>

<llo_original>
// kernel: tpu_custom_call.1
$region0: #{tpu_custom_call.1}
  #allocation0 [shape = 'u32[]', space=smem, size = 0x4, offset = 0x4, fixed_abs, tag = 'smem constant byte address 0x4 - core index']
  #allocation1 [shape = 'u32[144,128]{1,0:T(1,128)}', space=vmem, size = 0x12000, scoped, tag = 'internal scratch']
  %s0 = inlined_call_operand.hbm [shape: bf16[32,1920], index: 0, kind: input, shape index: {}]
  %s1 = inlined_call_operand.hbm [shape: bf16[1920,128], index: 1, kind: input, shape index: {}]
  %s2 = inlined_call_operand.vmem [shape: f32[1,128], index: 2, kind: input, shape index: {}]
  %s3 = inlined_call_operand.hbm [shape: bf16[128,128], index: 3, kind: input, shape index: {}]
  %s4 = inlined_call_operand.vmem [shape: f32[1,128], index: 4, kind: input, shape index: {}]
  %s5 = inlined_call_operand.hbm [shape: bf16[128,128], index: 5, kind: input, shape index: {}]
  %s6 = inlined_call_operand.vmem [shape: f32[1,128], index: 6, kind: input, shape index: {}]
  %s7 = inlined_call_operand.vmem [shape: f32[1,128], index: 7, kind: input, shape index: {}]
  %s8 = inlined_call_operand.vmem [shape: f32[1,128], index: 8, kind: input, shape index: {}]
  %s9 = inlined_call_operand.hbm [shape: f32[4,128], index: 9, kind: output, shape index: {}]
  %s10 = sld [smem:[#allocation0]]
  $region62: #{tpu_custom_call.1} parent=0
    _
  %s12 = ssub.s32 1, %s10
  %s13 = scalar_select 0, %s12, %s10
  $region1: #{tpu_custom_call.1} parent=0
    #allocation2 [shape = 'u8[122880]{0}', space=vmem, size = 0x1e000, scoped, tag = 'input window, operand 0, single buffered']
    #allocation3 [shape = 's32[1]{0}', space=sflag, size = 0x4, scoped, tag = 'scoped memory for tpu_custom_call.1']
    #allocation4 [shape = 's32[1]{0}', space=sflag, size = 0x4, scoped, tag = 'scoped memory for tpu_custom_call.1']
    #allocation5 [shape = 'u8[491520]{0}', space=vmem, size = 0x78000, scoped, tag = 'input window, operand 1, single buffered']
    #allocation6 [shape = 's32[1]{0}', space=sflag, size = 0x4, scoped, tag = 'scoped memory for tpu_custom_call.1']
    #allocation7 [shape = 'u8[32768]{0}', space=vmem, size = 0x8000, scoped, tag = 'input window, operand 3, single buffered']
    #allocation8 [shape = 'u8[32768]{0}', space=vmem, size = 0x8000, scoped, tag = 'input window, operand 5, single buffered']
    #allocation9 [shape = 's32[1]{0}', space=sflag, size = 0x4, scoped, tag = 'scoped memory for tpu_custom_call.1']
    #allocation10 [shape = 'u8[2048]{0}', space=vmem, size = 0x800, scoped, tag = 'output window, operand 0, single buffered']
    %14 = vsyncpa [#allocation3], 0
    %15 = vsyncpa [#allocation6], 0
    %16 = vsyncpa [#allocation9], 0
    %17 = vsyncpa [#allocation4], 0
    // Predicated region
    $region2: #{tpu_custom_call.1} parent=1 // pred_check
      _
    $region3: #{tpu_custom_call.1} parent=1 // pred_check_branch
      %19 = sbr.rel (0) target = $region5
    $region4: #{tpu_custom_call.1} parent=1 // pred_region
      %s21 = ssub.s32 3840, 3840
      %22 = vsyncadd [#allocation3], %s21
      %s23 = sshll.u32 [#allocation2], 4
      %s24 = int_to_ptr.vmem [resolvable:$true] %s23
      %29 = dma.hbm_to_vmem [thread:$0]  %s0, 3840, %s24, [#allocation3], 960, 960, 60
    $region5: #{tpu_custom_call.1} parent=1 // pred_fallthru
      _
    // Predicated region
    $region6: #{tpu_custom_call.1} parent=1 // pred_check
      _
    $region7: #{tpu_custom_call.1} parent=1 // pred_check_branch
      %31 = sbr.rel (0) target = $region9
    $region8: #{tpu_custom_call.1} parent=1 // pred_region
      %s33 = ssub.s32 15360, 15360
      %34 = vsyncadd [#allocation6], %s33
      %s35 = sshll.u32 [#allocation5], 4
      %s36 = int_to_ptr.vmem [resolvable:$true] %s35
      %41 = dma.hbm_to_vmem [thread:$0]  %s1, 15360, %s36, [#allocation6], 64, 64, 4
    $region9: #{tpu_custom_call.1} parent=1 // pred_fallthru
      _
    // Predicated region
    $region10: #{tpu_custom_call.1} parent=1 // pred_check
      _
    $region11: #{tpu_custom_call.1} parent=1 // pred_check_branch
      %43 = sbr.rel (0) target = $region13
    $region12: #{tpu_custom_call.1} parent=1 // pred_region
      _
    $region13: #{tpu_custom_call.1} parent=1 // pred_fallthru
      _
    // Predicated region
    $region14: #{tpu_custom_call.1} parent=1 // pred_check
      _
    $region15: #{tpu_custom_call.1} parent=1 // pred_check_branch
      %45 = sbr.rel (0) target = $region17
    $region16: #{tpu_custom_call.1} parent=1 // pred_region
      %s47 = ssub.s32 1024, 1024
      %48 = vsyncadd [#allocation6], %s47
      %s49 = sshll.u32 [#allocation7], 4
      %s50 = int_to_ptr.vmem [resolvable:$true] %s49
      %55 = dma.hbm_to_vmem [thread:$0]  %s3, 1024, %s50, [#allocation6], 64, 64, 4
    $region17: #{tpu_custom_call.1} parent=1 // pred_fallthru
      _
    // Predicated region
    $region18: #{tpu_custom_call.1} parent=1 // pred_check
      _
    $region19: #{tpu_custom_call.1} parent=1 // pred_check_branch
      %57 = sbr.rel (0) target = $region21
    $region20: #{tpu_custom_call.1} parent=1 // pred_region
      _
    $region21: #{tpu_custom_call.1} parent=1 // pred_fallthru
      _
    // Predicated region
    $region22: #{tpu_custom_call.1} parent=1 // pred_check
      _
    $region23: #{tpu_custom_call.1} parent=1 // pred_check_branch
      %59 = sbr.rel (0) target = $region25
    $region24: #{tpu_custom_call.1} parent=1 // pred_region
      %s61 = ssub.s32 1024, 1024
      %62 = vsyncadd [#allocation9], %s61
      %s63 = sshll.u32 [#allocation8], 4
      %s64 = int_to_ptr.vmem [resolvable:$true] %s63
      %69 = dma.hbm_to_vmem [thread:$0]  %s5, 1024, %s64, [#allocation9], 64, 64, 4
    $region25: #{tpu_custom_call.1} parent=1 // pred_fallthru
      _
    // Predicated region
    $region26: #{tpu_custom_call.1} parent=1 // pred_check
      _
    $region27: #{tpu_custom_call.1} parent=1 // pred_check_branch
      %71 = sbr.rel (0) target = $region29
    $region28: #{tpu_custom_call.1} parent=1 // pred_region
      _
    $region29: #{tpu_custom_call.1} parent=1 // pred_fallthru
      _
    // Predicated region
    $region30: #{tpu_custom_call.1} parent=1 // pred_check
      _
    $region31: #{tpu_custom_call.1} parent=1 // pred_check_branch
      %73 = sbr.rel (0) target = $region33
    $region32: #{tpu_custom_call.1} parent=1 // pred_region
      _
    $region33: #{tpu_custom_call.1} parent=1 // pred_fallthru
      _
    // Predicated region
    $region34: #{tpu_custom_call.1} parent=1 // pred_check
      _
    $region35: #{tpu_custom_call.1} parent=1 // pred_check_branch
      %75 = sbr.rel (0) target = $region37
    $region36: #{tpu_custom_call.1} parent=1 // pred_region
      _
    $region37: #{tpu_custom_call.1} parent=1 // pred_fallthru
      _
    // Predicated region
    $region38: #{tpu_custom_call.1} parent=1 // pred_check
      _
    $region39: #{tpu_custom_call.1} parent=1 // pred_check_branch
      %77 = sbr.rel (0) target = $region41
    $region40: #{tpu_custom_call.1} parent=1 // pred_region
      %78 = dma.done [#allocation3], 3840
    $region41: #{tpu_custom_call.1} parent=1 // pred_fallthru
      _
    // Predicated region
    $region42: #{tpu_custom_call.1} parent=1 // pred_check
      _
    $region43: #{tpu_custom_call.1} parent=1 // pred_check_branch
      %80 = sbr.rel (0) target = $region45
    $region44: #{tpu_custom_call.1} parent=1 // pred_region
      %81 = dma.done [#allocation6], 15360
    $region45: #{tpu_custom_call.1} parent=1 // pred_fallthru
      _
    // Predicated region
    $region46: #{tpu_custom_call.1} parent=1 // pred_check
      _
    $region47: #{tpu_custom_call.1} parent=1 // pred_check_branch
      %83 = sbr.rel (0) target = $region49
    $region48: #{tpu_custom_call.1} parent=1 // pred_region
      %84 = dma.done [#allocation6], 1024
    $region49: #{tpu_custom_call.1} parent=1 // pred_fallthru
      _
    // Predicated region
    $region50: #{tpu_custom_call.1} parent=1 // pred_check
      _
    $region51: #{tpu_custom_call.1} parent=1 // pred_check_branch
      %86 = sbr.rel (0) target = $region53
    $region52: #{tpu_custom_call.1} parent=1 // pred_region
      %87 = dma.done [#allocation9], 1024
    $region53: #{tpu_custom_call.1} parent=1 // pred_fallthru
      _
    %v89 = vld [vmem:[#allocation2] sm:$0xff]
    %v90 = vld [vmem:[#allocation2 + $0x8] sm:$0xff]
    %v91 = vld [vmem:[#allocation2 + $0x10] sm:$0xff]
    %v92 = vld [vmem:[#allocation2 + $0x18] sm:$0xff]
    %v93 = vld [vmem:[#allocation2 + $0x20] sm:$0xff]
    %v94 = vld [vmem:[#allocation2 + $0x28] sm:$0xff]
    %v95 = vld [vmem:[#allocation2 + $0x30] sm:$0xff]
    %v96 = vld [vmem:[#allocation2 + $0x38] sm:$0xf]
    %v97 = vld [vmem:[#allocation2 + $0x3c] sm:$0xff]
    %v98 = vld [vmem:[#allocation2 + $0x44] sm:$0xff]
    %v99 = vld [vmem:[#allocation2 + $0x4c] sm:$0xff]
    %v100 = vld [vmem:[#allocation2 + $0x54] sm:$0xff]
    %v101 = vld [vmem:[#allocation2 + $0x5c] sm:$0xff]
    %v102 = vld [vmem:[#allocation2 + $0x64] sm:$0xff]
    %v103 = vld [vmem:[#allocation2 + $0x6c] sm:$0xff]
    %v104 = vld [vmem:[#allocation2 + $0x74] sm:$0xf]
    %v105 = vld [vmem:[#allocation2 + $0x78] sm:$0xff]
    %v106 = vld [vmem:[#allocation2 + $0x80] sm:$0xff]
    %v107 = vld [vmem:[#allocation2 + $0x88] sm:$0xff]
    %v108 = vld [vmem:[#allocation2 + $0x90] sm:$0xff]
    %v109 = vld [vmem:[#allocation2 + $0x98] sm:$0xff]
    %v110 = vld [vmem:[#allocation2 + $0xa0] sm:$0xff]
    %v111 = vld [vmem:[#allocation2 + $0xa8] sm:$0xff]
    %v112 = vld [vmem:[#allocation2 + $0xb0] sm:$0xf]
    %v113 = vld [vmem:[#allocation2 + $0xb4] sm:$0xff]
    %v114 = vld [vmem:[#allocation2 + $0xbc] sm:$0xff]
    %v115 = vld [vmem:[#allocation2 + $0xc4] sm:$0xff]
    %v116 = vld [vmem:[#allocation2 + $0xcc] sm:$0xff]
    %v117 = vld [vmem:[#allocation2 + $0xd4] sm:$0xff]
    %v118 = vld [vmem:[#allocation2 + $0xdc] sm:$0xff]
    %v119 = vld [vmem:[#allocation2 + $0xe4] sm:$0xff]
    %v120 = vld [vmem:[#allocation2 + $0xec] sm:$0xf]
    %v121 = vld [vmem:[#allocation5] sm:$0xf]
    %v122 = vld [vmem:[#allocation5 + $0x4] sm:$0xf]
    %v123 = vld [vmem:[#allocation5 + $0x8] sm:$0xf]
    %v124 = vld [vmem:[#allocation5 + $0xc] sm:$0xf]
    %v125 = vld [vmem:[#allocation5 + $0x10] sm:$0xf]
    %v126 = vld [vmem:[#allocation5 + $0x14] sm:$0xf]
    %v127 = vld [vmem:[#allocation5 + $0x18] sm:$0xf]
    %v128 = vld [vmem:[#allocation5 + $0x1c] sm:$0xf]
    %v129 = vld [vmem:[#allocation5 + $0x20] sm:$0xf]
    %v130 = vld [vmem:[#allocation5 + $0x24] sm:$0xf]
    %v131 = vld [vmem:[#allocation5 + $0x28] sm:$0xf]
    %v132 = vld [vmem:[#allocation5 + $0x2c] sm:$0xf]
    %v133 = vld [vmem:[#allocation5 + $0x30] sm:$0xf]
    %v134 = vld [vmem:[#allocation5 + $0x34] sm:$0xf]
    %v135 = vld [vmem:[#allocation5 + $0x38] sm:$0xf]
    %v136 = vld [vmem:[#allocation5 + $0x3c] sm:$0xf]
    %v137 = vld [vmem:[#allocation5 + $0x40] sm:$0xf]
    %v138 = vld [vmem:[#allocation5 + $0x44] sm:$0xf]
    %v139 = vld [vmem:[#allocation5 + $0x48] sm:$0xf]
    %v140 = vld [vmem:[#allocation5 + $0x4c] sm:$0xf]
    %v141 = vld [vmem:[#allocation5 + $0x50] sm:$0xf]
    %v142 = vld [vmem:[#allocation5 + $0x54] sm:$0xf]
    %v143 = vld [vmem:[#allocation5 + $0x58] sm:$0xf]
    %v144 = vld [vmem:[#allocation5 + $0x5c] sm:$0xf]
    %v145 = vld [vmem:[#allocation5 + $0x60] sm:$0xf]
    %v146 = vld [vmem:[#allocation5 + $0x64] sm:$0xf]
    %v147 = vld [vmem:[#allocation5 + $0x68] sm:$0xf]
    %v148 = vld [vmem:[#allocation5 + $0x6c] sm:$0xf]
    %v149 = vld [vmem:[#allocation5 + $0x70] sm:$0xf]
    %v150 = vld [vmem:[#allocation5 + $0x74] sm:$0xf]
    %v151 = vld [vmem:[#allocation5 + $0x78] sm:$0xf]
    %v152 = vld [vmem:[#allocation5 + $0x7c] sm:$0xf]
    %v153 = vld [vmem:[#allocation5 + $0x80] sm:$0xf]
    %v154 = vld [vmem:[#allocation5 + $0x84] sm:$0xf]
    %v155 = vld [vmem:[#allocation5 + $0x88] sm:$0xf]
    %v156 = vld [vmem:[#allocation5 + $0x8c] sm:$0xf]
    %v157 = vld [vmem:[#allocation5 + $0x90] sm:$0xf]
    %v158 = vld [vmem:[#allocation5 + $0x94] sm:$0xf]
    %v159 = vld [vmem:[#allocation5 + $0x98] sm:$0xf]
    %v160 = vld [vmem:[#allocation5 + $0x9c] sm:$0xf]
    %v161 = vld [vmem:[#allocation5 + $0xa0] sm:$0xf]
    %v162 = vld [vmem:[#allocation5 + $0xa4] sm:$0xf]
    %v163 = vld [vmem:[#allocation5 + $0xa8] sm:$0xf]
    %v164 = vld [vmem:[#allocation5 + $0xac] sm:$0xf]
    %v165 = vld [vmem:[#allocation5 + $0xb0] sm:$0xf]
    %v166 = vld [vmem:[#allocation5 + $0xb4] sm:$0xf]
    %v167 = vld [vmem:[#allocation5 + $0xb8] sm:$0xf]
    %v168 = vld [vmem:[#allocation5 + $0xbc] sm:$0xf]
    %v169 = vld [vmem:[#allocation5 + $0xc0] sm:$0xf]
    %v170 = vld [vmem:[#allocation5 + $0xc4] sm:$0xf]
    %v171 = vld [vmem:[#allocation5 + $0xc8] sm:$0xf]
    %v172 = vld [vmem:[#allocation5 + $0xcc] sm:$0xf]
    %v173 = vld [vmem:[#allocation5 + $0xd0] sm:$0xf]
    %v174 = vld [vmem:[#allocation5 + $0xd4] sm:$0xf]
    %v175 = vld [vmem:[#allocation5 + $0xd8] sm:$0xf]
    %v176 = vld [vmem:[#allocation5 + $0xdc] sm:$0xf]
    %v177 = vld [vmem:[#allocation5 + $0xe0] sm:$0xf]
    %v178 = vld [vmem:[#allocation5 + $0xe4] sm:$0xf]
    %v179 = vld [vmem:[#allocation5 + $0xe8] sm:$0xf]
    %v180 = vld [vmem:[#allocation5 + $0xec] sm:$0xf]
    %v181 = vld [vmem:[#allocation5 + $0xf0] sm:$0xf]
    %v182 = vld [vmem:[#allocation5 + $0xf4] sm:$0xf]
    %v183 = vld [vmem:[#allocation5 + $0xf8] sm:$0xf]
    %v184 = vld [vmem:[#allocation5 + $0xfc] sm:$0xf]
    %v185 = vld [vmem:[#allocation5 + $0x100] sm:$0xf]
    %v186 = vld [vmem:[#allocation5 + $0x104] sm:$0xf]
    %v187 = vld [vmem:[#allocation5 + $0x108] sm:$0xf]
    %v188 = vld [vmem:[#allocation5 + $0x10c] sm:$0xf]
    %v189 = vld [vmem:[#allocation5 + $0x110] sm:$0xf]
    %v190 = vld [vmem:[#allocation5 + $0x114] sm:$0xf]
    %v191 = vld [vmem:[#allocation5 + $0x118] sm:$0xf]
    %v192 = vld [vmem:[#allocation5 + $0x11c] sm:$0xf]
    %v193 = vld [vmem:[#allocation5 + $0x120] sm:$0xf]
    %v194 = vld [vmem:[#allocation5 + $0x124] sm:$0xf]
    %v195 = vld [vmem:[#allocation5 + $0x128] sm:$0xf]
    %v196 = vld [vmem:[#allocation5 + $0x12c] sm:$0xf]
    %v197 = vld [vmem:[#allocation5 + $0x130] sm:$0xf]
    %v198 = vld [vmem:[#allocation5 + $0x134] sm:$0xf]
    %v199 = vld [vmem:[#allocation5 + $0x138] sm:$0xf]
    %v200 = vld [vmem:[#allocation5 + $0x13c] sm:$0xf]
    %v201 = vld [vmem:[#allocation5 + $0x140] sm:$0xf]
    %v202 = vld [vmem:[#allocation5 + $0x144] sm:$0xf]
    %v203 = vld [vmem:[#allocation5 + $0x148] sm:$0xf]
    %v204 = vld [vmem:[#allocation5 + $0x14c] sm:$0xf]
    %v205 = vld [vmem:[#allocation5 + $0x150] sm:$0xf]
    %v206 = vld [vmem:[#allocation5 + $0x154] sm:$0xf]
    %v207 = vld [vmem:[#allocation5 + $0x158] sm:$0xf]
    %v208 = vld [vmem:[#allocation5 + $0x15c] sm:$0xf]
    %v209 = vld [vmem:[#allocation5 + $0x160] sm:$0xf]
    %v210 = vld [vmem:[#allocation5 + $0x164] sm:$0xf]
    %v211 = vld [vmem:[#allocation5 + $0x168] sm:$0xf]
    %v212 = vld [vmem:[#allocation5 + $0x16c] sm:$0xf]
    %v213 = vld [vmem:[#allocation5 + $0x170] sm:$0xf]
    %v214 = vld [vmem:[#allocation5 + $0x174] sm:$0xf]
    %v215 = vld [vmem:[#allocation5 + $0x178] sm:$0xf]
    %v216 = vld [vmem:[#allocation5 + $0x17c] sm:$0xf]
    %v217 = vld [vmem:[#allocation5 + $0x180] sm:$0xf]
    %v218 = vld [vmem:[#allocation5 + $0x184] sm:$0xf]
    %v219 = vld [vmem:[#allocation5 + $0x188] sm:$0xf]
    %v220 = vld [vmem:[#allocation5 + $0x18c] sm:$0xf]
    %v221 = vld [vmem:[#allocation5 + $0x190] sm:$0xf]
    %v222 = vld [vmem:[#allocation5 + $0x194] sm:$0xf]
    %v223 = vld [vmem:[#allocation5 + $0x198] sm:$0xf]
    %v224 = vld [vmem:[#allocation5 + $0x19c] sm:$0xf]
    %v225 = vld [vmem:[#allocation5 + $0x1a0] sm:$0xf]
    %v226 = vld [vmem:[#allocation5 + $0x1a4] sm:$0xf]
    %v227 = vld [vmem:[#allocation5 + $0x1a8] sm:$0xf]
    %v228 = vld [vmem:[#allocation5 + $0x1ac] sm:$0xf]
    %v229 = vld [vmem:[#allocation5 + $0x1b0] sm:$0xf]
    %v230 = vld [vmem:[#allocation5 + $0x1b4] sm:$0xf]
    %v231 = vld [vmem:[#allocation5 + $0x1b8] sm:$0xf]
    %v232 = vld [vmem:[#allocation5 + $0x1bc] sm:$0xf]
    %v233 = vld [vmem:[#allocation5 + $0x1c0] sm:$0xf]
    %v234 = vld [vmem:[#allocation5 + $0x1c4] sm:$0xf]
    %v235 = vld [vmem:[#allocation5 + $0x1c8] sm:$0xf]
    %v236 = vld [vmem:[#allocation5 + $0x1cc] sm:$0xf]
    %v237 = vld [vmem:[#allocation5 + $0x1d0] sm:$0xf]
    %v238 = vld [vmem:[#allocation5 + $0x1d4] sm:$0xf]
    %v239 = vld [vmem:[#allocation5 + $0x1d8] sm:$0xf]
    %v240 = vld [vmem:[#allocation5 + $0x1dc] sm:$0xf]
    %v241 = vld [vmem:[#allocation5 + $0x1e0] sm:$0xf]
    %v242 = vld [vmem:[#allocation5 + $0x1e4] sm:$0xf]
    %v243 = vld [vmem:[#allocation5 + $0x1e8] sm:$0xf]
    %v244 = vld [vmem:[#allocation5 + $0x1ec] sm:$0xf]
    %v245 = vld [vmem:[#allocation5 + $0x1f0] sm:$0xf]
    %v246 = vld [vmem:[#allocation5 + $0x1f4] sm:$0xf]
    %v247 = vld [vmem:[#allocation5 + $0x1f8] sm:$0xf]
    %v248 = vld [vmem:[#allocation5 + $0x1fc] sm:$0xf]
    %v249 = vld [vmem:[#allocation5 + $0x200] sm:$0xf]
    %v250 = vld [vmem:[#allocation5 + $0x204] sm:$0xf]
    %v251 = vld [vmem:[#allocation5 + $0x208] sm:$0xf]
    %v252 = vld [vmem:[#allocation5 + $0x20c] sm:$0xf]
    %v253 = vld [vmem:[#allocation5 + $0x210] sm:$0xf]
    %v254 = vld [vmem:[#allocation5 + $0x214] sm:$0xf]
    %v255 = vld [vmem:[#allocation5 + $0x218] sm:$0xf]
    %v256 = vld [vmem:[#allocation5 + $0x21c] sm:$0xf]
    %v257 = vld [vmem:[#allocation5 + $0x220] sm:$0xf]
    %v258 = vld [vmem:[#allocation5 + $0x224] sm:$0xf]
    %v259 = vld [vmem:[#allocation5 + $0x228] sm:$0xf]
    %v260 = vld [vmem:[#allocation5 + $0x22c] sm:$0xf]
    %v261 = vld [vmem:[#allocation5 + $0x230] sm:$0xf]
    %v262 = vld [vmem:[#allocation5 + $0x234] sm:$0xf]
    %v263 = vld [vmem:[#allocation5 + $0x238] sm:$0xf]
    %v264 = vld [vmem:[#allocation5 + $0x23c] sm:$0xf]
    %v265 = vld [vmem:[#allocation5 + $0x240] sm:$0xf]
    %v266 = vld [vmem:[#allocation5 + $0x244] sm:$0xf]
    %v267 = vld [vmem:[#allocation5 + $0x248] sm:$0xf]
    %v268 = vld [vmem:[#allocation5 + $0x24c] sm:$0xf]
    %v269 = vld [vmem:[#allocation5 + $0x250] sm:$0xf]
    %v270 = vld [vmem:[#allocation5 + $0x254] sm:$0xf]
    %v271 = vld [vmem:[#allocation5 + $0x258] sm:$0xf]
    %v272 = vld [vmem:[#allocation5 + $0x25c] sm:$0xf]
    %v273 = vld [vmem:[#allocation5 + $0x260] sm:$0xf]
    %v274 = vld [vmem:[#allocation5 + $0x264] sm:$0xf]
    %v275 = vld [vmem:[#allocation5 + $0x268] sm:$0xf]
    %v276 = vld [vmem:[#allocation5 + $0x26c] sm:$0xf]
    %v277 = vld [vmem:[#allocation5 + $0x270] sm:$0xf]
    %v278 = vld [vmem:[#allocation5 + $0x274] sm:$0xf]
    %v279 = vld [vmem:[#allocation5 + $0x278] sm:$0xf]
    %v280 = vld [vmem:[#allocation5 + $0x27c] sm:$0xf]
    %v281 = vld [vmem:[#allocation5 + $0x280] sm:$0xf]
    %v282 = vld [vmem:[#allocation5 + $0x284] sm:$0xf]
    %v283 = vld [vmem:[#allocation5 + $0x288] sm:$0xf]
    %v284 = vld [vmem:[#allocation5 + $0x28c] sm:$0xf]
    %v285 = vld [vmem:[#allocation5 + $0x290] sm:$0xf]
    %v286 = vld [vmem:[#allocation5 + $0x294] sm:$0xf]
    %v287 = vld [vmem:[#allocation5 + $0x298] sm:$0xf]
    %v288 = vld [vmem:[#allocation5 + $0x29c] sm:$0xf]
    %v289 = vld [vmem:[#allocation5 + $0x2a0] sm:$0xf]
    %v290 = vld [vmem:[#allocation5 + $0x2a4] sm:$0xf]
    %v291 = vld [vmem:[#allocation5 + $0x2a8] sm:$0xf]
    %v292 = vld [vmem:[#allocation5 + $0x2ac] sm:$0xf]
    %v293 = vld [vmem:[#allocation5 + $0x2b0] sm:$0xf]
    %v294 = vld [vmem:[#allocation5 + $0x2b4] sm:$0xf]
    %v295 = vld [vmem:[#allocation5 + $0x2b8] sm:$0xf]
    %v296 = vld [vmem:[#allocation5 + $0x2bc] sm:$0xf]
    %v297 = vld [vmem:[#allocation5 + $0x2c0] sm:$0xf]
    %v298 = vld [vmem:[#allocation5 + $0x2c4] sm:$0xf]
    %v299 = vld [vmem:[#allocation5 + $0x2c8] sm:$0xf]
    %v300 = vld [vmem:[#allocation5 + $0x2cc] sm:$0xf]
    %v301 = vld [vmem:[#allocation5 + $0x2d0] sm:$0xf]
    %v302 = vld [vmem:[#allocation5 + $0x2d4] sm:$0xf]
    %v303 = vld [vmem:[#allocation5 + $0x2d8] sm:$0xf]
    %v304 = vld [vmem:[#allocation5 + $0x2dc] sm:$0xf]
    %v305 = vld [vmem:[#allocation5 + $0x2e0] sm:$0xf]
    %v306 = vld [vmem:[#allocation5 + $0x2e4] sm:$0xf]
    %v307 = vld [vmem:[#allocation5 + $0x2e8] sm:$0xf]
    %v308 = vld [vmem:[#allocation5 + $0x2ec] sm:$0xf]
    %v309 = vld [vmem:[#allocation5 + $0x2f0] sm:$0xf]
    %v310 = vld [vmem:[#allocation5 + $0x2f4] sm:$0xf]
    %v311 = vld [vmem:[#allocation5 + $0x2f8] sm:$0xf]
    %v312 = vld [vmem:[#allocation5 + $0x2fc] sm:$0xf]
    %v313 = vld [vmem:[#allocation5 + $0x300] sm:$0xf]
    %v314 = vld [vmem:[#allocation5 + $0x304] sm:$0xf]
    %v315 = vld [vmem:[#allocation5 + $0x308] sm:$0xf]
    %v316 = vld [vmem:[#allocation5 + $0x30c] sm:$0xf]
    %v317 = vld [vmem:[#allocation5 + $0x310] sm:$0xf]
    %v318 = vld [vmem:[#allocation5 + $0x314] sm:$0xf]
    %v319 = vld [vmem:[#allocation5 + $0x318] sm:$0xf]
    %v320 = vld [vmem:[#allocation5 + $0x31c] sm:$0xf]
    %v321 = vld [vmem:[#allocation5 + $0x320] sm:$0xf]
    %v322 = vld [vmem:[#allocation5 + $0x324] sm:$0xf]
    %v323 = vld [vmem:[#allocation5 + $0x328] sm:$0xf]
    %v324 = vld [vmem:[#allocation5 + $0x32c] sm:$0xf]
    %v325 = vld [vmem:[#allocation5 + $0x330] sm:$0xf]
    %v326 = vld [vmem:[#allocation5 + $0x334] sm:$0xf]
    %v327 = vld [vmem:[#allocation5 + $0x338] sm:$0xf]
    %v328 = vld [vmem:[#allocation5 + $0x33c] sm:$0xf]
    %v329 = vld [vmem:[#allocation5 + $0x340] sm:$0xf]
    %v330 = vld [vmem:[#allocation5 + $0x344] sm:$0xf]
    %v331 = vld [vmem:[#allocation5 + $0x348] sm:$0xf]
    %v332 = vld [vmem:[#allocation5 + $0x34c] sm:$0xf]
    %v333 = vld [vmem:[#allocation5 + $0x350] sm:$0xf]
    %v334 = vld [vmem:[#allocation5 + $0x354] sm:$0xf]
    %v335 = vld [vmem:[#allocation5 + $0x358] sm:$0xf]
    %v336 = vld [vmem:[#allocation5 + $0x35c] sm:$0xf]
    %v337 = vld [vmem:[#allocation5 + $0x360] sm:$0xf]
    %v338 = vld [vmem:[#allocation5 + $0x364] sm:$0xf]
    %v339 = vld [vmem:[#allocation5 + $0x368] sm:$0xf]
    %v340 = vld [vmem:[#allocation5 + $0x36c] sm:$0xf]
    %v341 = vld [vmem:[#allocation5 + $0x370] sm:$0xf]
    %v342 = vld [vmem:[#allocation5 + $0x374] sm:$0xf]
    %v343 = vld [vmem:[#allocation5 + $0x378] sm:$0xf]
    %v344 = vld [vmem:[#allocation5 + $0x37c] sm:$0xf]
    %v345 = vld [vmem:[#allocation5 + $0x380] sm:$0xf]
    %v346 = vld [vmem:[#allocation5 + $0x384] sm:$0xf]
    %v347 = vld [vmem:[#allocation5 + $0x388] sm:$0xf]
    %v348 = vld [vmem:[#allocation5 + $0x38c] sm:$0xf]
    %v349 = vld [vmem:[#allocation5 + $0x390] sm:$0xf]
    %v350 = vld [vmem:[#allocation5 + $0x394] sm:$0xf]
    %v351 = vld [vmem:[#allocation5 + $0x398] sm:$0xf]
    %v352 = vld [vmem:[#allocation5 + $0x39c] sm:$0xf]
    %v353 = vld [vmem:[#allocation5 + $0x3a0] sm:$0xf]
    %v354 = vld [vmem:[#allocation5 + $0x3a4] sm:$0xf]
    %v355 = vld [vmem:[#allocation5 + $0x3a8] sm:$0xf]
    %v356 = vld [vmem:[#allocation5 + $0x3ac] sm:$0xf]
    %v357 = vld [vmem:[#allocation5 + $0x3b0] sm:$0xf]
    %v358 = vld [vmem:[#allocation5 + $0x3b4] sm:$0xf]
    %v359 = vld [vmem:[#allocation5 + $0x3b8] sm:$0xf]
    %v360 = vld [vmem:[#allocation5 + $0x3bc] sm:$0xf]
    %v361 = vld [vmem:[%s2] sm:$0x1]
    %v363 = vlaneseq
    %v364 = vshrl.u32 %v363, 7
    %v365 = vsub.s32 0, %v364
    %v366 = vrot.slane %v361, %v365
    %v400 = vunpack.c.l.b16 %v89
    %v401 = vunpack.c.h.b16 %v89
    %v402 = vunpack.c.l.b16 %v90
    %v403 = vunpack.c.h.b16 %v90
    %v404 = vunpack.c.l.b16 %v91
    %v405 = vunpack.c.h.b16 %v91
    %v406 = vunpack.c.l.b16 %v92
    %v407 = vunpack.c.h.b16 %v92
    %v408 = vunpack.c.l.b16 %v93
    %v409 = vunpack.c.h.b16 %v93
    %v410 = vunpack.c.l.b16 %v94
    %v411 = vunpack.c.h.b16 %v94
    %v412 = vunpack.c.l.b16 %v95
    %v413 = vunpack.c.h.b16 %v95
    %v414 = vunpack.c.l.b16 %v96
    %v415 = vunpack.c.l.b16 %v97
    %v416 = vunpack.c.h.b16 %v97
    %v417 = vunpack.c.l.b16 %v98
    %v418 = vunpack.c.h.b16 %v98
    %v419 = vunpack.c.l.b16 %v99
    %v420 = vunpack.c.h.b16 %v99
    %v421 = vunpack.c.l.b16 %v100
    %v422 = vunpack.c.h.b16 %v100
    %v423 = vunpack.c.l.b16 %v101
    %v424 = vunpack.c.h.b16 %v101
    %v425 = vunpack.c.l.b16 %v102
    %v426 = vunpack.c.h.b16 %v102
    %v427 = vunpack.c.l.b16 %v103
    %v428 = vunpack.c.h.b16 %v103
    %v429 = vunpack.c.l.b16 %v104
    %v430 = vunpack.c.l.b16 %v105
    %v431 = vunpack.c.h.b16 %v105
    %v432 = vunpack.c.l.b16 %v106
    %v433 = vunpack.c.h.b16 %v106
    %v434 = vunpack.c.l.b16 %v107
    %v435 = vunpack.c.h.b16 %v107
    %v436 = vunpack.c.l.b16 %v108
    %v437 = vunpack.c.h.b16 %v108
    %v438 = vunpack.c.l.b16 %v109
    %v439 = vunpack.c.h.b16 %v109
    %v440 = vunpack.c.l.b16 %v110
    %v441 = vunpack.c.h.b16 %v110
    %v442 = vunpack.c.l.b16 %v111
    %v443 = vunpack.c.h.b16 %v111
    %v444 = vunpack.c.l.b16 %v112
    %v445 = vunpack.c.l.b16 %v113
    %v446 = vunpack.c.h.b16 %v113
    %v447 = vunpack.c.l.b16 %v114
    %v448 = vunpack.c.h.b16 %v114
    %v449 = vunpack.c.l.b16 %v115
    %v450 = vunpack.c.h.b16 %v115
    %v451 = vunpack.c.l.b16 %v116
    %v452 = vunpack.c.h.b16 %v116
    %v453 = vunpack.c.l.b16 %v117
    %v454 = vunpack.c.h.b16 %v117
    %v455 = vunpack.c.l.b16 %v118
    %v456 = vunpack.c.h.b16 %v118
    %v457 = vunpack.c.l.b16 %v119
    %v458 = vunpack.c.h.b16 %v119
    %v459 = vunpack.c.l.b16 %v120
    %v460 = vpack.c.b16 %v415, %v400
    %v461 = vpack.c.b16 %v416, %v401
    %v462 = vpack.c.b16 %v417, %v402
    %v463 = vpack.c.b16 %v418, %v403
    %v464 = vpack.c.b16 %v419, %v404
    %v465 = vpack.c.b16 %v420, %v405
    %v466 = vpack.c.b16 %v421, %v406
    %v467 = vpack.c.b16 %v422, %v407
    %v468 = vpack.c.b16 %v423, %v408
    %v469 = vpack.c.b16 %v424, %v409
    %v470 = vpack.c.b16 %v425, %v410
    %v471 = vpack.c.b16 %v426, %v411
    %v472 = vpack.c.b16 %v427, %v412
    %v473 = vpack.c.b16 %v428, %v413
    %v474 = vpack.c.b16 %v429, %v414
    %v475 = vpack.c.b16 %v445, %v430
    %v476 = vpack.c.b16 %v446, %v431
    %v477 = vpack.c.b16 %v447, %v432
    %v478 = vpack.c.b16 %v448, %v433
    %v479 = vpack.c.b16 %v449, %v434
    %v480 = vpack.c.b16 %v450, %v435
    %v481 = vpack.c.b16 %v451, %v436
    %v482 = vpack.c.b16 %v452, %v437
    %v483 = vpack.c.b16 %v453, %v438
    %v484 = vpack.c.b16 %v454, %v439
    %v485 = vpack.c.b16 %v455, %v440
    %v486 = vpack.c.b16 %v456, %v441
    %v487 = vpack.c.b16 %v457, %v442
    %v488 = vpack.c.b16 %v458, %v443
    %v489 = vpack.c.b16 %v459, %v444
    %v760 = vunpack.c.l.b16 %v121
    %v761 = vunpack.c.l.b16 %v122
    %v762 = vunpack.c.l.b16 %v123
    %v763 = vunpack.c.l.b16 %v124
    %v764 = vunpack.c.l.b16 %v125
    %v765 = vunpack.c.l.b16 %v126
    %v766 = vunpack.c.l.b16 %v127
    %v767 = vunpack.c.l.b16 %v128
    %v768 = vunpack.c.l.b16 %v129
    %v769 = vunpack.c.l.b16 %v130
    %v770 = vunpack.c.l.b16 %v131
    %v771 = vunpack.c.l.b16 %v132
    %v772 = vunpack.c.l.b16 %v133
    %v773 = vunpack.c.l.b16 %v134
    %v774 = vunpack.c.l.b16 %v135
    %v775 = vunpack.c.l.b16 %v136
    %v776 = vunpack.c.l.b16 %v137
    %v777 = vunpack.c.l.b16 %v138
    %v778 = vunpack.c.l.b16 %v139
    %v779 = vunpack.c.l.b16 %v140
    %v780 = vunpack.c.l.b16 %v141
    %v781 = vunpack.c.l.b16 %v142
    %v782 = vunpack.c.l.b16 %v143
    %v783 = vunpack.c.l.b16 %v144
    %v784 = vunpack.c.l.b16 %v145
    %v785 = vunpack.c.l.b16 %v146
    %v786 = vunpack.c.l.b16 %v147
    %v787 = vunpack.c.l.b16 %v148
    %v788 = vunpack.c.l.b16 %v149
    %v789 = vunpack.c.l.b16 %v150
    %v790 = vunpack.c.l.b16 %v151
    %v791 = vunpack.c.l.b16 %v152
    %v792 = vunpack.c.l.b16 %v153
    %v793 = vunpack.c.l.b16 %v154
    %v794 = vunpack.c.l.b16 %v155
    %v795 = vunpack.c.l.b16 %v156
    %v796 = vunpack.c.l.b16 %v157
    %v797 = vunpack.c.l.b16 %v158
    %v798 = vunpack.c.l.b16 %v159
    %v799 = vunpack.c.l.b16 %v160
    %v800 = vunpack.c.l.b16 %v161
    %v801 = vunpack.c.l.b16 %v162
    %v802 = vunpack.c.l.b16 %v163
    %v803 = vunpack.c.l.b16 %v164
    %v804 = vunpack.c.l.b16 %v165
    %v805 = vunpack.c.l.b16 %v166
    %v806 = vunpack.c.l.b16 %v167
    %v807 = vunpack.c.l.b16 %v168
    %v808 = vunpack.c.l.b16 %v169
    %v809 = vunpack.c.l.b16 %v170
    %v810 = vunpack.c.l.b16 %v171
    %v811 = vunpack.c.l.b16 %v172
    %v812 = vunpack.c.l.b16 %v173
    %v813 = vunpack.c.l.b16 %v174
    %v814 = vunpack.c.l.b16 %v175
    %v815 = vunpack.c.l.b16 %v176
    %v816 = vunpack.c.l.b16 %v177
    %v817 = vunpack.c.l.b16 %v178
    %v818 = vunpack.c.l.b16 %v179
    %v819 = vunpack.c.l.b16 %v180
    %v820 = vunpack.c.l.b16 %v181
    %v821 = vunpack.c.l.b16 %v182
    %v822 = vunpack.c.l.b16 %v183
    %v823 = vunpack.c.l.b16 %v184
    %v824 = vunpack.c.l.b16 %v185
    %v825 = vunpack.c.l.b16 %v186
    %v826 = vunpack.c.l.b16 %v187
    %v827 = vunpack.c.l.b16 %v188
    %v828 = vunpack.c.l.b16 %v189
    %v829 = vunpack.c.l.b16 %v190
    %v830 = vunpack.c.l.b16 %v191
    %v831 = vunpack.c.l.b16 %v192
    %v832 = vunpack.c.l.b16 %v193
    %v833 = vunpack.c.l.b16 %v194
    %v834 = vunpack.c.l.b16 %v195
    %v835 = vunpack.c.l.b16 %v196
    %v836 = vunpack.c.l.b16 %v197
    %v837 = vunpack.c.l.b16 %v198
    %v838 = vunpack.c.l.b16 %v199
    %v839 = vunpack.c.l.b16 %v200
    %v840 = vunpack.c.l.b16 %v201
    %v841 = vunpack.c.l.b16 %v202
    %v842 = vunpack.c.l.b16 %v203
    %v843 = vunpack.c.l.b16 %v204
    %v844 = vunpack.c.l.b16 %v205
    %v845 = vunpack.c.l.b16 %v206
    %v846 = vunpack.c.l.b16 %v207
    %v847 = vunpack.c.l.b16 %v208
    %v848 = vunpack.c.l.b16 %v209
    %v849 = vunpack.c.l.b16 %v210
    %v850 = vunpack.c.l.b16 %v211
    %v851 = vunpack.c.l.b16 %v212
    %v852 = vunpack.c.l.b16 %v213
    %v853 = vunpack.c.l.b16 %v214
    %v854 = vunpack.c.l.b16 %v215
    %v855 = vunpack.c.l.b16 %v216
    %v856 = vunpack.c.l.b16 %v217
    %v857 = vunpack.c.l.b16 %v218
    %v858 = vunpack.c.l.b16 %v219
    %v859 = vunpack.c.l.b16 %v220
    %v860 = vunpack.c.l.b16 %v221
    %v861 = vunpack.c.l.b16 %v222
    %v862 = vunpack.c.l.b16 %v223
    %v863 = vunpack.c.l.b16 %v224
    %v864 = vunpack.c.l.b16 %v225
    %v865 = vunpack.c.l.b16 %v226
    %v866 = vunpack.c.l.b16 %v227
    %v867 = vunpack.c.l.b16 %v228
    %v868 = vunpack.c.l.b16 %v229
    %v869 = vunpack.c.l.b16 %v230
    %v870 = vunpack.c.l.b16 %v231
    %v871 = vunpack.c.l.b16 %v232
    %v872 = vunpack.c.l.b16 %v233
    %v873 = vunpack.c.l.b16 %v234
    %v874 = vunpack.c.l.b16 %v235
    %v875 = vunpack.c.l.b16 %v236
    %v876 = vunpack.c.l.b16 %v237
    %v877 = vunpack.c.l.b16 %v238
    %v878 = vunpack.c.l.b16 %v239
    %v879 = vunpack.c.l.b16 %v240
    %v880 = vunpack.c.l.b16 %v241
    %v881 = vunpack.c.l.b16 %v242
    %v882 = vunpack.c.l.b16 %v243
    %v883 = vunpack.c.l.b16 %v244
    %v884 = vunpack.c.l.b16 %v245
    %v885 = vunpack.c.l.b16 %v246
    %v886 = vunpack.c.l.b16 %v247
    %v887 = vunpack.c.l.b16 %v248
    %v888 = vunpack.c.l.b16 %v249
    %v889 = vunpack.c.l.b16 %v250
    %v890 = vunpack.c.l.b16 %v251
    %v891 = vunpack.c.l.b16 %v252
    %v892 = vunpack.c.l.b16 %v253
    %v893 = vunpack.c.l.b16 %v254
    %v894 = vunpack.c.l.b16 %v255
    %v895 = vunpack.c.l.b16 %v256
    %v896 = vunpack.c.l.b16 %v257
    %v897 = vunpack.c.l.b16 %v258
    %v898 = vunpack.c.l.b16 %v259
    %v899 = vunpack.c.l.b16 %v260
    %v900 = vunpack.c.l.b16 %v261
    %v901 = vunpack.c.l.b16 %v262
    %v902 = vunpack.c.l.b16 %v263
    %v903 = vunpack.c.l.b16 %v264
    %v904 = vunpack.c.l.b16 %v265
    %v905 = vunpack.c.l.b16 %v266
    %v906 = vunpack.c.l.b16 %v267
    %v907 = vunpack.c.l.b16 %v268
    %v908 = vunpack.c.l.b16 %v269
    %v909 = vunpack.c.l.b16 %v270
    %v910 = vunpack.c.l.b16 %v271
    %v911 = vunpack.c.l.b16 %v272
    %v912 = vunpack.c.l.b16 %v273
    %v913 = vunpack.c.l.b16 %v274
    %v914 = vunpack.c.l.b16 %v275
    %v915 = vunpack.c.l.b16 %v276
    %v916 = vunpack.c.l.b16 %v277
    %v917 = vunpack.c.l.b16 %v278
    %v918 = vunpack.c.l.b16 %v279
    %v919 = vunpack.c.l.b16 %v280
    %v920 = vunpack.c.l.b16 %v281
    %v921 = vunpack.c.l.b16 %v282
    %v922 = vunpack.c.l.b16 %v283
    %v923 = vunpack.c.l.b16 %v284
    %v924 = vunpack.c.l.b16 %v285
    %v925 = vunpack.c.l.b16 %v286
    %v926 = vunpack.c.l.b16 %v287
    %v927 = vunpack.c.l.b16 %v288
    %v928 = vunpack.c.l.b16 %v289
    %v929 = vunpack.c.l.b16 %v290
    %v930 = vunpack.c.l.b16 %v291
    %v931 = vunpack.c.l.b16 %v292
    %v932 = vunpack.c.l.b16 %v293
    %v933 = vunpack.c.l.b16 %v294
    %v934 = vunpack.c.l.b16 %v295
    %v935 = vunpack.c.l.b16 %v296
    %v936 = vunpack.c.l.b16 %v297
    %v937 = vunpack.c.l.b16 %v298
    %v938 = vunpack.c.l.b16 %v299
    %v939 = vunpack.c.l.b16 %v300
    %v940 = vunpack.c.l.b16 %v301
    %v941 = vunpack.c.l.b16 %v302
    %v942 = vunpack.c.l.b16 %v303
    %v943 = vunpack.c.l.b16 %v304
    %v944 = vunpack.c.l.b16 %v305
    %v945 = vunpack.c.l.b16 %v306
    %v946 = vunpack.c.l.b16 %v307
    %v947 = vunpack.c.l.b16 %v308
    %v948 = vunpack.c.l.b16 %v309
    %v949 = vunpack.c.l.b16 %v310
    %v950 = vunpack.c.l.b16 %v311
    %v951 = vunpack.c.l.b16 %v312
    %v952 = vunpack.c.l.b16 %v313
    %v953 = vunpack.c.l.b16 %v314
    %v954 = vunpack.c.l.b16 %v315
    %v955 = vunpack.c.l.b16 %v316
    %v956 = vunpack.c.l.b16 %v317
    %v957 = vunpack.c.l.b16 %v318
    %v958 = vunpack.c.l.b16 %v319
    %v959 = vunpack.c.l.b16 %v320
    %v960 = vunpack.c.l.b16 %v321
    %v961 = vunpack.c.l.b16 %v322
    %v962 = vunpack.c.l.b16 %v323
    %v963 = vunpack.c.l.b16 %v324
    %v964 = vunpack.c.l.b16 %v325
    %v965 = vunpack.c.l.b16 %v326
    %v966 = vunpack.c.l.b16 %v327
    %v967 = vunpack.c.l.b16 %v328
    %v968 = vunpack.c.l.b16 %v329
    %v969 = vunpack.c.l.b16 %v330
    %v970 = vunpack.c.l.b16 %v331
    %v971 = vunpack.c.l.b16 %v332
    %v972 = vunpack.c.l.b16 %v333
    %v973 = vunpack.c.l.b16 %v334
    %v974 = vunpack.c.l.b16 %v335
    %v975 = vunpack.c.l.b16 %v336
    %v976 = vunpack.c.l.b16 %v337
    %v977 = vunpack.c.l.b16 %v338
    %v978 = vunpack.c.l.b16 %v339
    %v979 = vunpack.c.l.b16 %v340
    %v980 = vunpack.c.l.b16 %v341
    %v981 = vunpack.c.l.b16 %v342
    %v982 = vunpack.c.l.b16 %v343
    %v983 = vunpack.c.l.b16 %v344
    %v984 = vunpack.c.l.b16 %v345
    %v985 = vunpack.c.l.b16 %v346
    %v986 = vunpack.c.l.b16 %v347
    %v987 = vunpack.c.l.b16 %v348
    %v988 = vunpack.c.l.b16 %v349
    %v989 = vunpack.c.l.b16 %v350
    %v990 = vunpack.c.l.b16 %v351
    %v991 = vunpack.c.l.b16 %v352
    %v992 = vunpack.c.l.b16 %v353
    %v993 = vunpack.c.l.b16 %v354
    %v994 = vunpack.c.l.b16 %v355
    %v995 = vunpack.c.l.b16 %v356
    %v996 = vunpack.c.l.b16 %v357
    %v997 = vunpack.c.l.b16 %v358
    %v998 = vunpack.c.l.b16 %v359
    %v999 = vunpack.c.l.b16 %v360
    %v1000 = vpack.c.b16 %v761, %v760
    %v1001 = vpack.c.b16 %v763, %v762
    %v1002 = vpack.c.b16 %v765, %v764
    %v1003 = vpack.c.b16 %v767, %v766
    %v1004 = vpack.c.b16 %v769, %v768
    %v1005 = vpack.c.b16 %v771, %v770
    %v1006 = vpack.c.b16 %v773, %v772
    %v1007 = vpack.c.b16 %v775, %v774
    %v1008 = vpack.c.b16 %v777, %v776
    %v1009 = vpack.c.b16 %v779, %v778
    %v1010 = vpack.c.b16 %v781, %v780
    %v1011 = vpack.c.b16 %v783, %v782
    %v1012 = vpack.c.b16 %v785, %v784
    %v1013 = vpack.c.b16 %v787, %v786
    %v1014 = vpack.c.b16 %v789, %v788
    %v1015 = vpack.c.b16 %v791, %v790
    %v1016 = vpack.c.b16 %v793, %v792
    %v1017 = vpack.c.b16 %v795, %v794
    %v1018 = vpack.c.b16 %v797, %v796
    %v1019 = vpack.c.b16 %v799, %v798
    %v1020 = vpack.c.b16 %v801, %v800
    %v1021 = vpack.c.b16 %v803, %v802
    %v1022 = vpack.c.b16 %v805, %v804
    %v1023 = vpack.c.b16 %v807, %v806
    %v1024 = vpack.c.b16 %v809, %v808
    %v1025 = vpack.c.b16 %v811, %v810
    %v1026 = vpack.c.b16 %v813, %v812
    %v1027 = vpack.c.b16 %v815, %v814
    %v1028 = vpack.c.b16 %v817, %v816
    %v1029 = vpack.c.b16 %v819, %v818
    %v1030 = vpack.c.b16 %v821, %v820
    %v1031 = vpack.c.b16 %v823, %v822
    %v1032 = vpack.c.b16 %v825, %v824
    %v1033 = vpack.c.b16 %v827, %v826
    %v1034 = vpack.c.b16 %v829, %v828
    %v1035 = vpack.c.b16 %v831, %v830
    %v1036 = vpack.c.b16 %v833, %v832
    %v1037 = vpack.c.b16 %v835, %v834
    %v1038 = vpack.c.b16 %v837, %v836
    %v1039 = vpack.c.b16 %v839, %v838
    %v1040 = vpack.c.b16 %v841, %v840
    %v1041 = vpack.c.b16 %v843, %v842
    %v1042 = vpack.c.b16 %v845, %v844
    %v1043 = vpack.c.b16 %v847, %v846
    %v1044 = vpack.c.b16 %v849, %v848
    %v1045 = vpack.c.b16 %v851, %v850
    %v1046 = vpack.c.b16 %v853, %v852
    %v1047 = vpack.c.b16 %v855, %v854
    %v1048 = vpack.c.b16 %v857, %v856
    %v1049 = vpack.c.b16 %v859, %v858
    %v1050 = vpack.c.b16 %v861, %v860
    %v1051 = vpack.c.b16 %v863, %v862
    %v1052 = vpack.c.b16 %v865, %v864
    %v1053 = vpack.c.b16 %v867, %v866
    %v1054 = vpack.c.b16 %v869, %v868
    %v1055 = vpack.c.b16 %v871, %v870
    %v1056 = vpack.c.b16 %v873, %v872
    %v1057 = vpack.c.b16 %v875, %v874
    %v1058 = vpack.c.b16 %v877, %v876
    %v1059 = vpack.c.b16 %v879, %v878
    %v1060 = vpack.c.b16 %v881, %v880
    %v1061 = vpack.c.b16 %v883, %v882
    %v1062 = vpack.c.b16 %v885, %v884
    %v1063 = vpack.c.b16 %v887, %v886
    %v1064 = vpack.c.b16 %v889, %v888
    %v1065 = vpack.c.b16 %v891, %v890
    %v1066 = vpack.c.b16 %v893, %v892
    %v1067 = vpack.c.b16 %v895, %v894
    %v1068 = vpack.c.b16 %v897, %v896
    %v1069 = vpack.c.b16 %v899, %v898
    %v1070 = vpack.c.b16 %v901, %v900
    %v1071 = vpack.c.b16 %v903, %v902
    %v1072 = vpack.c.b16 %v905, %v904
    %v1073 = vpack.c.b16 %v907, %v906
    %v1074 = vpack.c.b16 %v909, %v908
    %v1075 = vpack.c.b16 %v911, %v910
    %v1076 = vpack.c.b16 %v913, %v912
    %v1077 = vpack.c.b16 %v915, %v914
    %v1078 = vpack.c.b16 %v917, %v916
    %v1079 = vpack.c.b16 %v919, %v918
    %v1080 = vpack.c.b16 %v921, %v920
    %v1081 = vpack.c.b16 %v923, %v922
    %v1082 = vpack.c.b16 %v925, %v924
    %v1083 = vpack.c.b16 %v927, %v926
    %v1084 = vpack.c.b16 %v929, %v928
    %v1085 = vpack.c.b16 %v931, %v930
    %v1086 = vpack.c.b16 %v933, %v932
    %v1087 = vpack.c.b16 %v935, %v934
    %v1088 = vpack.c.b16 %v937, %v936
    %v1089 = vpack.c.b16 %v939, %v938
    %v1090 = vpack.c.b16 %v941, %v940
    %v1091 = vpack.c.b16 %v943, %v942
    %v1092 = vpack.c.b16 %v945, %v944
    %v1093 = vpack.c.b16 %v947, %v946
    %v1094 = vpack.c.b16 %v949, %v948
    %v1095 = vpack.c.b16 %v951, %v950
    %v1096 = vpack.c.b16 %v953, %v952
    %v1097 = vpack.c.b16 %v955, %v954
    %v1098 = vpack.c.b16 %v957, %v956
    %v1099 = vpack.c.b16 %v959, %v958
    %v1100 = vpack.c.b16 %v961, %v960
    %v1101 = vpack.c.b16 %v963, %v962
    %v1102 = vpack.c.b16 %v965, %v964
    %v1103 = vpack.c.b16 %v967, %v966
    %v1104 = vpack.c.b16 %v969, %v968
    %v1105 = vpack.c.b16 %v971, %v970
    %v1106 = vpack.c.b16 %v973, %v972
    %v1107 = vpack.c.b16 %v975, %v974
    %v1108 = vpack.c.b16 %v977, %v976
    %v1109 = vpack.c.b16 %v979, %v978
    %v1110 = vpack.c.b16 %v981, %v980
    %v1111 = vpack.c.b16 %v983, %v982
    %v1112 = vpack.c.b16 %v985, %v984
    %v1113 = vpack.c.b16 %v987, %v986
    %v1114 = vpack.c.b16 %v989, %v988
    %v1115 = vpack.c.b16 %v991, %v990
    %v1116 = vpack.c.b16 %v993, %v992
    %v1117 = vpack.c.b16 %v995, %v994
    %v1118 = vpack.c.b16 %v997, %v996
    %v1119 = vpack.c.b16 %v999, %v998
    %1240 = vmatprep.subr.bf16.mxu0 0
    %1241 = vmatpush1.bf16.msra.mxu0 %v1007
    %1242 = vmatprep.subr.bf16.mxu0 0
    %1243 = vmatpush1.bf16.msra.mxu0 %v1006
    %1244 = vmatprep.subr.bf16.mxu0 0
    %1245 = vmatpush1.bf16.msra.mxu0 %v1005
    %1246 = vmatprep.subr.bf16.mxu0 0
    %1247 = vmatpush1.bf16.msra.mxu0 %v1004
    %1248 = vmatprep.subr.bf16.mxu0 0
    %1249 = vmatpush1.bf16.msra.mxu0 %v1003
    %1250 = vmatprep.subr.bf16.mxu0 0
    %1251 = vmatpush1.bf16.msra.mxu0 %v1002
    %1252 = vmatprep.subr.bf16.mxu0 0
    %1253 = vmatpush1.bf16.msra.mxu0 %v1001
    %1254 = vmatprep.subr.bf16.mxu0 0
    %1255 = vmatpush1.bf16.msra.mxu0 %v1000
    %1256 = vmatprep.subr.bf16.mxu0 0
    %1257 = vmatpush2.bf16.msra.mxu0 %v1015
    %1258 = vmatprep.subr.bf16.mxu0 0
    %1259 = vmatpush2.bf16.msra.mxu0 %v1014
    %1260 = vmatprep.subr.bf16.mxu0 0
    %1261 = vmatpush2.bf16.msra.mxu0 %v1013
    %1262 = vmatprep.subr.bf16.mxu0 0
    %1263 = vmatpush2.bf16.msra.mxu0 %v1012
    %1264 = vmatprep.subr.bf16.mxu0 0
    %1265 = vmatpush2.bf16.msra.mxu0 %v1011
    %1266 = vmatprep.subr.bf16.mxu0 0
    %1267 = vmatpush2.bf16.msra.mxu0 %v1010
    %1268 = vmatprep.subr.bf16.mxu0 0
    %1269 = vmatpush2.bf16.msra.mxu0 %v1009
    %1270 = vmatprep.subr.bf16.mxu0 0
    %1271 = vmatpush2.bf16.msra.mxu0 %v1008
    %1272 = vmatprep.mubr.bf16.mxu0 %v461
    %1273 = vmatmul.mubr.bf16.gmra.mxu0 %v460
    %v1274 = vpop.f32.mrf.mxu0
    %v1275 = vadd.f32 %v366, %v1274
    %v1276 = vpop.f32.mrf.mxu0
    %v1277 = vpop.f32.mrf.mxu0
    %v1278 = vadd.f32 %v366, %v1277
    %v1279 = vpop.f32.mrf.mxu0
    %1280 = vmatprep.mubr.bf16.mxu0 %v476
    %1281 = vmatmul.mubr.bf16.gmra.mxu0 %v475
    %v1282 = vpop.f32.mrf.mxu0
    %v1283 = vadd.f32 %v366, %v1282
    %v1284 = vpop.f32.mrf.mxu0
    %v1285 = vpop.f32.mrf.mxu0
    %v1286 = vadd.f32 %v366, %v1285
    %v1287 = vpop.f32.mrf.mxu0
    %1288 = vdwg.mxu0
    %1289 = vmatprep.subr.bf16.mxu0 0
    %1290 = vmatpush1.bf16.msra.mxu0 %v1023
    %1291 = vmatprep.subr.bf16.mxu0 0
    %1292 = vmatpush1.bf16.msra.mxu0 %v1022
    %1293 = vmatprep.subr.bf16.mxu0 0
    %1294 = vmatpush1.bf16.msra.mxu0 %v1021
    %1295 = vmatprep.subr.bf16.mxu0 0
    %1296 = vmatpush1.bf16.msra.mxu0 %v1020
    %1297 = vmatprep.subr.bf16.mxu0 0
    %1298 = vmatpush1.bf16.msra.mxu0 %v1019
    %1299 = vmatprep.subr.bf16.mxu0 0
    %1300 = vmatpush1.bf16.msra.mxu0 %v1018
    %1301 = vmatprep.subr.bf16.mxu0 0
    %1302 = vmatpush1.bf16.msra.mxu0 %v1017
    %1303 = vmatprep.subr.bf16.mxu0 0
    %1304 = vmatpush1.bf16.msra.mxu0 %v1016
    %1305 = vmatprep.subr.bf16.mxu0 0
    %1306 = vmatpush2.bf16.msra.mxu0 %v1031
    %1307 = vmatprep.subr.bf16.mxu0 0
    %1308 = vmatpush2.bf16.msra.mxu0 %v1030
    %1309 = vmatprep.subr.bf16.mxu0 0
    %1310 = vmatpush2.bf16.msra.mxu0 %v1029
    %1311 = vmatprep.subr.bf16.mxu0 0
    %1312 = vmatpush2.bf16.msra.mxu0 %v1028
    %1313 = vmatprep.subr.bf16.mxu0 0
    %1314 = vmatpush2.bf16.msra.mxu0 %v1027
    %1315 = vmatprep.subr.bf16.mxu0 0
    %1316 = vmatpush2.bf16.msra.mxu0 %v1026
    %1317 = vmatprep.subr.bf16.mxu0 0
    %1318 = vmatpush2.bf16.msra.mxu0 %v1025
    %1319 = vmatprep.subr.bf16.mxu0 0
    %1320 = vmatpush2.bf16.msra.mxu0 %v1024
    %1321 = vmatprep.mubr.bf16.mxu0 %v463
    %1322 = vmatmul.mubr.bf16.gmra.mxu0 %v462
    %v1323 = vpop.f32.mrf.mxu0
    %v1324 = vadd.f32 %v1275, %v1323
    %v1325 = vpop.f32.mrf.mxu0
    %v1326 = vpop.f32.mrf.mxu0
    %v1327 = vadd.f32 %v1278, %v1326
    %v1328 = vpop.f32.mrf.mxu0
    %1329 = vmatprep.mubr.bf16.mxu0 %v478
    %1330 = vmatmul.mubr.bf16.gmra.mxu0 %v477
    %v1331 = vpop.f32.mrf.mxu0
    %v1332 = vadd.f32 %v1283, %v1331
    %v1333 = vpop.f32.mrf.mxu0
    %v1334 = vpop.f32.mrf.mxu0
    %v1335 = vadd.f32 %v1286, %v1334
    %v1336 = vpop.f32.mrf.mxu0
    %1337 = vdwg.mxu0
    %1338 = vmatprep.subr.bf16.mxu0 0
    %1339 = vmatpush1.bf16.msra.mxu0 %v1039
    %1340 = vmatprep.subr.bf16.mxu0 0
    %1341 = vmatpush1.bf16.msra.mxu0 %v1038
    %1342 = vmatprep.subr.bf16.mxu0 0
    %1343 = vmatpush1.bf16.msra.mxu0 %v1037
    %1344 = vmatprep.subr.bf16.mxu0 0
    %1345 = vmatpush1.bf16.msra.mxu0 %v1036
    %1346 = vmatprep.subr.bf16.mxu0 0
    %1347 = vmatpush1.bf16.msra.mxu0 %v1035
    %1348 = vmatprep.subr.bf16.mxu0 0
    %1349 = vmatpush1.bf16.msra.mxu0 %v1034
    %1350 = vmatprep.subr.bf16.mxu0 0
    %1351 = vmatpush1.bf16.msra.mxu0 %v1033
    %1352 = vmatprep.subr.bf16.mxu0 0
    %1353 = vmatpush1.bf16.msra.mxu0 %v1032
    %1354 = vmatprep.subr.bf16.mxu0 0
    %1355 = vmatpush2.bf16.msra.mxu0 %v1047
    %1356 = vmatprep.subr.bf16.mxu0 0
    %1357 = vmatpush2.bf16.msra.mxu0 %v1046
    %1358 = vmatprep.subr.bf16.mxu0 0
    %1359 = vmatpush2.bf16.msra.mxu0 %v1045
    %1360 = vmatprep.subr.bf16.mxu0 0
    %1361 = vmatpush2.bf16.msra.mxu0 %v1044
    %1362 = vmatprep.subr.bf16.mxu0 0
    %1363 = vmatpush2.bf16.msra.mxu0 %v1043
    %1364 = vmatprep.subr.bf16.mxu0 0
    %1365 = vmatpush2.bf16.msra.mxu0 %v1042
    %1366 = vmatprep.subr.bf16.mxu0 0
    %1367 = vmatpush2.bf16.msra.mxu0 %v1041
    %1368 = vmatprep.subr.bf16.mxu0 0
    %1369 = vmatpush2.bf16.msra.mxu0 %v1040
    %1370 = vmatprep.mubr.bf16.mxu0 %v465
    %1371 = vmatmul.mubr.bf16.gmra.mxu0 %v464
    %v1372 = vpop.f32.mrf.mxu0
    %v1373 = vadd.f32 %v1324, %v1372
    %v1374 = vpop.f32.mrf.mxu0
    %v1375 = vpop.f32.mrf.mxu0
    %v1376 = vadd.f32 %v1327, %v1375
    %v1377 = vpop.f32.mrf.mxu0
    %1378 = vmatprep.mubr.bf16.mxu0 %v480
    %1379 = vmatmul.mubr.bf16.gmra.mxu0 %v479
    %v1380 = vpop.f32.mrf.mxu0
    %v1381 = vadd.f32 %v1332, %v1380
    %v1382 = vpop.f32.mrf.mxu0
    %v1383 = vpop.f32.mrf.mxu0
    %v1384 = vadd.f32 %v1335, %v1383
    %v1385 = vpop.f32.mrf.mxu0
    %1386 = vdwg.mxu0
    %1387 = vmatprep.subr.bf16.mxu0 0
    %1388 = vmatpush1.bf16.msra.mxu0 %v1055
    %1389 = vmatprep.subr.bf16.mxu0 0
    %1390 = vmatpush1.bf16.msra.mxu0 %v1054
    %1391 = vmatprep.subr.bf16.mxu0 0
    %1392 = vmatpush1.bf16.msra.mxu0 %v1053
    %1393 = vmatprep.subr.bf16.mxu0 0
    %1394 = vmatpush1.bf16.msra.mxu0 %v1052
    %1395 = vmatprep.subr.bf16.mxu0 0
    %1396 = vmatpush1.bf16.msra.mxu0 %v1051
    %1397 = vmatprep.subr.bf16.mxu0 0
    %1398 = vmatpush1.bf16.msra.mxu0 %v1050
    %1399 = vmatprep.subr.bf16.mxu0 0
    %1400 = vmatpush1.bf16.msra.mxu0 %v1049
    %1401 = vmatprep.subr.bf16.mxu0 0
    %1402 = vmatpush1.bf16.msra.mxu0 %v1048
    %1403 = vmatprep.subr.bf16.mxu0 0
    %1404 = vmatpush2.bf16.msra.mxu0 %v1063
    %1405 = vmatprep.subr.bf16.mxu0 0
    %1406 = vmatpush2.bf16.msra.mxu0 %v1062
    %1407 = vmatprep.subr.bf16.mxu0 0
    %1408 = vmatpush2.bf16.msra.mxu0 %v1061
    %1409 = vmatprep.subr.bf16.mxu0 0
    %1410 = vmatpush2.bf16.msra.mxu0 %v1060
    %1411 = vmatprep.subr.bf16.mxu0 0
    %1412 = vmatpush2.bf16.msra.mxu0 %v1059
    %1413 = vmatprep.subr.bf16.mxu0 0
    %1414 = vmatpush2.bf16.msra.mxu0 %v1058
    %1415 = vmatprep.subr.bf16.mxu0 0
    %1416 = vmatpush2.bf16.msra.mxu0 %v1057
    %1417 = vmatprep.subr.bf16.mxu0 0
    %1418 = vmatpush2.bf16.msra.mxu0 %v1056
    %1419 = vmatprep.mubr.bf16.mxu0 %v467
    %1420 = vmatmul.mubr.bf16.gmra.mxu0 %v466
    %v1421 = vpop.f32.mrf.mxu0
    %v1422 = vadd.f32 %v1373, %v1421
    %v1423 = vpop.f32.mrf.mxu0
    %v1424 = vpop.f32.mrf.mxu0
    %v1425 = vadd.f32 %v1376, %v1424
    %v1426 = vpop.f32.mrf.mxu0
    %1427 = vmatprep.mubr.bf16.mxu0 %v482
    %1428 = vmatmul.mubr.bf16.gmra.mxu0 %v481
    %v1429 = vpop.f32.mrf.mxu0
    %v1430 = vadd.f32 %v1381, %v1429
    %v1431 = vpop.f32.mrf.mxu0
    %v1432 = vpop.f32.mrf.mxu0
    %v1433 = vadd.f32 %v1384, %v1432
    %v1434 = vpop.f32.mrf.mxu0
    %1435 = vdwg.mxu0
    %1436 = vmatprep.subr.bf16.mxu0 0
    %1437 = vmatpush1.bf16.msra.mxu0 %v1071
    %1438 = vmatprep.subr.bf16.mxu0 0
    %1439 = vmatpush1.bf16.msra.mxu0 %v1070
    %1440 = vmatprep.subr.bf16.mxu0 0
    %1441 = vmatpush1.bf16.msra.mxu0 %v1069
    %1442 = vmatprep.subr.bf16.mxu0 0
    %1443 = vmatpush1.bf16.msra.mxu0 %v1068
    %1444 = vmatprep.subr.bf16.mxu0 0
    %1445 = vmatpush1.bf16.msra.mxu0 %v1067
    %1446 = vmatprep.subr.bf16.mxu0 0
    %1447 = vmatpush1.bf16.msra.mxu0 %v1066
    %1448 = vmatprep.subr.bf16.mxu0 0
    %1449 = vmatpush1.bf16.msra.mxu0 %v1065
    %1450 = vmatprep.subr.bf16.mxu0 0
    %1451 = vmatpush1.bf16.msra.mxu0 %v1064
    %1452 = vmatprep.subr.bf16.mxu0 0
    %1453 = vmatpush2.bf16.msra.mxu0 %v1079
    %1454 = vmatprep.subr.bf16.mxu0 0
    %1455 = vmatpush2.bf16.msra.mxu0 %v1078
    %1456 = vmatprep.subr.bf16.mxu0 0
    %1457 = vmatpush2.bf16.msra.mxu0 %v1077
    %1458 = vmatprep.subr.bf16.mxu0 0
    %1459 = vmatpush2.bf16.msra.mxu0 %v1076
    %1460 = vmatprep.subr.bf16.mxu0 0
    %1461 = vmatpush2.bf16.msra.mxu0 %v1075
    %1462 = vmatprep.subr.bf16.mxu0 0
    %1463 = vmatpush2.bf16.msra.mxu0 %v1074
    %1464 = vmatprep.subr.bf16.mxu0 0
    %1465 = vmatpush2.bf16.msra.mxu0 %v1073
    %1466 = vmatprep.subr.bf16.mxu0 0
    %1467 = vmatpush2.bf16.msra.mxu0 %v1072
    %1468 = vmatprep.mubr.bf16.mxu0 %v469
    %1469 = vmatmul.mubr.bf16.gmra.mxu0 %v468
    %v1470 = vpop.f32.mrf.mxu0
    %v1471 = vadd.f32 %v1422, %v1470
    %v1472 = vpop.f32.mrf.mxu0
    %v1473 = vpop.f32.mrf.mxu0
    %v1474 = vadd.f32 %v1425, %v1473
    %v1475 = vpop.f32.mrf.mxu0
    %1476 = vmatprep.mubr.bf16.mxu0 %v484
    %1477 = vmatmul.mubr.bf16.gmra.mxu0 %v483
    %v1478 = vpop.f32.mrf.mxu0
    %v1479 = vadd.f32 %v1430, %v1478
    %v1480 = vpop.f32.mrf.mxu0
    %v1481 = vpop.f32.mrf.mxu0
    %v1482 = vadd.f32 %v1433, %v1481
    %v1483 = vpop.f32.mrf.mxu0
    %1484 = vdwg.mxu0
    %1485 = vmatprep.subr.bf16.mxu0 0
    %1486 = vmatpush1.bf16.msra.mxu0 %v1087
    %1487 = vmatprep.subr.bf16.mxu0 0
    %1488 = vmatpush1.bf16.msra.mxu0 %v1086
    %1489 = vmatprep.subr.bf16.mxu0 0
    %1490 = vmatpush1.bf16.msra.mxu0 %v1085
    %1491 = vmatprep.subr.bf16.mxu0 0
    %1492 = vmatpush1.bf16.msra.mxu0 %v1084
    %1493 = vmatprep.subr.bf16.mxu0 0
    %1494 = vmatpush1.bf16.msra.mxu0 %v1083
    %1495 = vmatprep.subr.bf16.mxu0 0
    %1496 = vmatpush1.bf16.msra.mxu0 %v1082
    %1497 = vmatprep.subr.bf16.mxu0 0
    %1498 = vmatpush1.bf16.msra.mxu0 %v1081
    %1499 = vmatprep.subr.bf16.mxu0 0
    %1500 = vmatpush1.bf16.msra.mxu0 %v1080
    %1501 = vmatprep.subr.bf16.mxu0 0
    %1502 = vmatpush2.bf16.msra.mxu0 %v1095
    %1503 = vmatprep.subr.bf16.mxu0 0
    %1504 = vmatpush2.bf16.msra.mxu0 %v1094
    %1505 = vmatprep.subr.bf16.mxu0 0
    %1506 = vmatpush2.bf16.msra.mxu0 %v1093
    %1507 = vmatprep.subr.bf16.mxu0 0
    %1508 = vmatpush2.bf16.msra.mxu0 %v1092
    %1509 = vmatprep.subr.bf16.mxu0 0
    %1510 = vmatpush2.bf16.msra.mxu0 %v1091
    %1511 = vmatprep.subr.bf16.mxu0 0
    %1512 = vmatpush2.bf16.msra.mxu0 %v1090
    %1513 = vmatprep.subr.bf16.mxu0 0
    %1514 = vmatpush2.bf16.msra.mxu0 %v1089
    %1515 = vmatprep.subr.bf16.mxu0 0
    %1516 = vmatpush2.bf16.msra.mxu0 %v1088
    %1517 = vmatprep.mubr.bf16.mxu0 %v471
    %1518 = vmatmul.mubr.bf16.gmra.mxu0 %v470
    %v1519 = vpop.f32.mrf.mxu0
    %v1520 = vadd.f32 %v1471, %v1519
    %v1521 = vpop.f32.mrf.mxu0
    %v1522 = vpop.f32.mrf.mxu0
    %v1523 = vadd.f32 %v1474, %v1522
    %v1524 = vpop.f32.mrf.mxu0
    %1525 = vmatprep.mubr.bf16.mxu0 %v486
    %1526 = vmatmul.mubr.bf16.gmra.mxu0 %v485
    %v1527 = vpop.f32.mrf.mxu0
    %v1528 = vadd.f32 %v1479, %v1527
    %v1529 = vpop.f32.mrf.mxu0
    %v1530 = vpop.f32.mrf.mxu0
    %v1531 = vadd.f32 %v1482, %v1530
    %v1532 = vpop.f32.mrf.mxu0
    %1533 = vdwg.mxu0
    %1534 = vmatprep.subr.bf16.mxu0 0
    %1535 = vmatpush1.bf16.msra.mxu0 %v1103
    %1536 = vmatprep.subr.bf16.mxu0 0
    %1537 = vmatpush1.bf16.msra.mxu0 %v1102
    %1538 = vmatprep.subr.bf16.mxu0 0
    %1539 = vmatpush1.bf16.msra.mxu0 %v1101
    %1540 = vmatprep.subr.bf16.mxu0 0
    %1541 = vmatpush1.bf16.msra.mxu0 %v1100
    %1542 = vmatprep.subr.bf16.mxu0 0
    %1543 = vmatpush1.bf16.msra.mxu0 %v1099
    %1544 = vmatprep.subr.bf16.mxu0 0
    %1545 = vmatpush1.bf16.msra.mxu0 %v1098
    %1546 = vmatprep.subr.bf16.mxu0 0
    %1547 = vmatpush1.bf16.msra.mxu0 %v1097
    %1548 = vmatprep.subr.bf16.mxu0 0
    %1549 = vmatpush1.bf16.msra.mxu0 %v1096
    %1550 = vmatprep.subr.bf16.mxu0 0
    %1551 = vmatpush2.bf16.msra.mxu0 %v1111
    %1552 = vmatprep.subr.bf16.mxu0 0
    %1553 = vmatpush2.bf16.msra.mxu0 %v1110
    %1554 = vmatprep.subr.bf16.mxu0 0
    %1555 = vmatpush2.bf16.msra.mxu0 %v1109
    %1556 = vmatprep.subr.bf16.mxu0 0
    %1557 = vmatpush2.bf16.msra.mxu0 %v1108
    %1558 = vmatprep.subr.bf16.mxu0 0
    %1559 = vmatpush2.bf16.msra.mxu0 %v1107
    %1560 = vmatprep.subr.bf16.mxu0 0
    %1561 = vmatpush2.bf16.msra.mxu0 %v1106
    %1562 = vmatprep.subr.bf16.mxu0 0
    %1563 = vmatpush2.bf16.msra.mxu0 %v1105
    %1564 = vmatprep.subr.bf16.mxu0 0
    %1565 = vmatpush2.bf16.msra.mxu0 %v1104
    %1566 = vmatprep.mubr.bf16.mxu0 %v473
    %1567 = vmatmul.mubr.bf16.gmra.mxu0 %v472
    %v1568 = vpop.f32.mrf.mxu0
    %v1569 = vadd.f32 %v1520, %v1568
    %v1570 = vpop.f32.mrf.mxu0
    %v1571 = vpop.f32.mrf.mxu0
    %v1572 = vadd.f32 %v1523, %v1571
    %v1573 = vpop.f32.mrf.mxu0
    %1574 = vmatprep.mubr.bf16.mxu0 %v488
    %1575 = vmatmul.mubr.bf16.gmra.mxu0 %v487
    %v1576 = vpop.f32.mrf.mxu0
    %v1577 = vadd.f32 %v1528, %v1576
    %v1578 = vpop.f32.mrf.mxu0
    %v1579 = vpop.f32.mrf.mxu0
    %v1580 = vadd.f32 %v1531, %v1579
    %v1581 = vpop.f32.mrf.mxu0
    %1582 = vdwg.mxu0
    %1583 = vmatprep.subr.bf16.mxu0 0
    %1584 = vmatpush1.bf16.msra.mxu0 %v1119
    %1585 = vmatprep.subr.bf16.mxu0 0
    %1586 = vmatpush1.bf16.msra.mxu0 %v1118
    %1587 = vmatprep.subr.bf16.mxu0 0
    %1588 = vmatpush1.bf16.msra.mxu0 %v1117
    %1589 = vmatprep.subr.bf16.mxu0 0
    %1590 = vmatpush1.bf16.msra.mxu0 %v1116
    %1591 = vmatprep.subr.bf16.mxu0 0
    %1592 = vmatpush1.bf16.msra.mxu0 %v1115
    %1593 = vmatprep.subr.bf16.mxu0 0
    %1594 = vmatpush1.bf16.msra.mxu0 %v1114
    %1595 = vmatprep.subr.bf16.mxu0 0
    %1596 = vmatpush1.bf16.msra.mxu0 %v1113
    %1597 = vmatprep.subr.bf16.mxu0 0
    %1598 = vmatpush1.bf16.msra.mxu0 %v1112
    %1599 = vmatprep.subr.bf16.mxu0 0
    %1600 = vmatpush2.bf16.msra.mxu0 0
    %1601 = vmatprep.subr.bf16.mxu0 0
    %1602 = vmatpush2.bf16.msra.mxu0 0
    %1603 = vmatprep.subr.bf16.mxu0 0
    %1604 = vmatpush2.bf16.msra.mxu0 0
    %1605 = vmatprep.subr.bf16.mxu0 0
    %1606 = vmatpush2.bf16.msra.mxu0 0
    %1607 = vmatprep.subr.bf16.mxu0 0
    %1608 = vmatpush2.bf16.msra.mxu0 0
    %1609 = vmatprep.subr.bf16.mxu0 0
    %1610 = vmatpush2.bf16.msra.mxu0 0
    %1611 = vmatprep.subr.bf16.mxu0 0
    %1612 = vmatpush2.bf16.msra.mxu0 0
    %1613 = vmatprep.subr.bf16.mxu0 0
    %1614 = vmatpush2.bf16.msra.mxu0 0
    %1615 = vmatprep.mubr.bf16.mxu0 0
    %1616 = vmatmul.mubr.bf16.gmra.mxu0 %v474
    %v1617 = vpop.f32.mrf.mxu0
    %v1618 = vadd.f32 %v1569, %v1617
    %v1619 = vpop.f32.mrf.mxu0
    %v1620 = vpop.f32.mrf.mxu0
    %v1621 = vadd.f32 %v1572, %v1620
    %v1622 = vpop.f32.mrf.mxu0
    %1623 = vmatprep.mubr.bf16.mxu0 0
    %1624 = vmatmul.mubr.bf16.gmra.mxu0 %v489
    %v1625 = vpop.f32.mrf.mxu0
    %v1626 = vadd.f32 %v1577, %v1625
    %v1627 = vpop.f32.mrf.mxu0
    %v1628 = vpop.f32.mrf.mxu0
    %v1629 = vadd.f32 %v1580, %v1628
    %v1630 = vpop.f32.mrf.mxu0
    %1631 = vdwg.mxu0
    %v1632 = vmax.f32 %v1618, 0.0
    %v1633 = vmax.f32 %v1621, 0.0
    %v1634 = vmax.f32 %v1626, 0.0
    %v1635 = vmax.f32 %v1629, 0.0
    %v1636 = vrot.slane %v1632, 4
    %v1637 = vmax.f32 %v1632, %v1636
    %v1638 = vrot.slane %v1637, 2
    %v1639 = vmax.f32 %v1637, %v1638
    %v1640 = vrot.slane %v1639, 1
    %v1641 = vmax.f32 %v1639, %v1640
    %v1642 = vrot.slane %v1633, 4
    %v1643 = vmax.f32 %v1633, %v1642
    %v1644 = vrot.slane %v1643, 2
    %v1645 = vmax.f32 %v1643, %v1644
    %v1646 = vrot.slane %v1645, 1
    %v1647 = vmax.f32 %v1645, %v1646
    %v1648 = vrot.slane %v1634, 4
    %v1649 = vmax.f32 %v1634, %v1648
    %v1650 = vrot.slane %v1649, 2
    %v1651 = vmax.f32 %v1649, %v1650
    %v1652 = vrot.slane %v1651, 1
    %v1653 = vmax.f32 %v1651, %v1652
    %v1654 = vrot.slane %v1635, 4
    %v1655 = vmax.f32 %v1635, %v1654
    %v1656 = vrot.slane %v1655, 2
    %v1657 = vmax.f32 %v1655, %v1656
    %v1658 = vrot.slane %v1657, 1
    %v1659 = vmax.f32 %v1657, %v1658
    %v1660 = vpack.c.bf16 %v1633, %v1632
    %v1661 = vpack.c.bf16 %v1635, %v1634
    %v1662 = vld [vmem:[#allocation7] sm:$0xf]
    %v1663 = vld [vmem:[#allocation7 + $0x4] sm:$0xf]
    %v1664 = vld [vmem:[#allocation7 + $0x8] sm:$0xf]
    %v1665 = vld [vmem:[#allocation7 + $0xc] sm:$0xf]
    %v1666 = vld [vmem:[#allocation7 + $0x10] sm:$0xf]
    %v1667 = vld [vmem:[#allocation7 + $0x14] sm:$0xf]
    %v1668 = vld [vmem:[#allocation7 + $0x18] sm:$0xf]
    %v1669 = vld [vmem:[#allocation7 + $0x1c] sm:$0xf]
    %v1670 = vld [vmem:[#allocation7 + $0x20] sm:$0xf]
    %v1671 = vld [vmem:[#allocation7 + $0x24] sm:$0xf]
    %v1672 = vld [vmem:[#allocation7 + $0x28] sm:$0xf]
    %v1673 = vld [vmem:[#allocation7 + $0x2c] sm:$0xf]
    %v1674 = vld [vmem:[#allocation7 + $0x30] sm:$0xf]
    %v1675 = vld [vmem:[#allocation7 + $0x34] sm:$0xf]
    %v1676 = vld [vmem:[#allocation7 + $0x38] sm:$0xf]
    %v1677 = vld [vmem:[#allocation7 + $0x3c] sm:$0xf]
    %v1678 = vld [vmem:[%s4] sm:$0x1]
    %v1680 = vlaneseq
    %v1681 = vshrl.u32 %v1680, 7
    %v1682 = vsub.s32 0, %v1681
    %v1683 = vrot.slane %v1678, %v1682
    %v1701 = vunpack.c.l.b16 %v1662
    %v1702 = vunpack.c.l.b16 %v1663
    %v1703 = vunpack.c.l.b16 %v1664
    %v1704 = vunpack.c.l.b16 %v1665
    %v1705 = vunpack.c.l.b16 %v1666
    %v1706 = vunpack.c.l.b16 %v1667
    %v1707 = vunpack.c.l.b16 %v1668
    %v1708 = vunpack.c.l.b16 %v1669
    %v1709 = vunpack.c.l.b16 %v1670
    %v1710 = vunpack.c.l.b16 %v1671
    %v1711 = vunpack.c.l.b16 %v1672
    %v1712 = vunpack.c.l.b16 %v1673
    %v1713 = vunpack.c.l.b16 %v1674
    %v1714 = vunpack.c.l.b16 %v1675
    %v1715 = vunpack.c.l.b16 %v1676
    %v1716 = vunpack.c.l.b16 %v1677
    %v1717 = vpack.c.b16 %v1702, %v1701
    %v1718 = vpack.c.b16 %v1704, %v1703
    %v1719 = vpack.c.b16 %v1706, %v1705
    %v1720 = vpack.c.b16 %v1708, %v1707
    %v1721 = vpack.c.b16 %v1710, %v1709
    %v1722 = vpack.c.b16 %v1712, %v1711
    %v1723 = vpack.c.b16 %v1714, %v1713
    %v1724 = vpack.c.b16 %v1716, %v1715
    %1733 = vmatprep.subr.bf16.mxu0 0
    %1734 = vmatpush1.bf16.msra.mxu0 %v1724
    %1735 = vmatprep.subr.bf16.mxu0 0
    %1736 = vmatpush1.bf16.msra.mxu0 %v1723
    %1737 = vmatprep.subr.bf16.mxu0 0
    %1738 = vmatpush1.bf16.msra.mxu0 %v1722
    %1739 = vmatprep.subr.bf16.mxu0 0
    %1740 = vmatpush1.bf16.msra.mxu0 %v1721
    %1741 = vmatprep.subr.bf16.mxu0 0
    %1742 = vmatpush1.bf16.msra.mxu0 %v1720
    %1743 = vmatprep.subr.bf16.mxu0 0
    %1744 = vmatpush1.bf16.msra.mxu0 %v1719
    %1745 = vmatprep.subr.bf16.mxu0 0
    %1746 = vmatpush1.bf16.msra.mxu0 %v1718
    %1747 = vmatprep.subr.bf16.mxu0 0
    %1748 = vmatpush1.bf16.msra.mxu0 %v1717
    %1749 = vmatprep.subr.bf16.mxu0 0
    %1750 = vmatpush2.bf16.msra.mxu0 0
    %1751 = vmatprep.subr.bf16.mxu0 0
    %1752 = vmatpush2.bf16.msra.mxu0 0
    %1753 = vmatprep.subr.bf16.mxu0 0
    %1754 = vmatpush2.bf16.msra.mxu0 0
    %1755 = vmatprep.subr.bf16.mxu0 0
    %1756 = vmatpush2.bf16.msra.mxu0 0
    %1757 = vmatprep.subr.bf16.mxu0 0
    %1758 = vmatpush2.bf16.msra.mxu0 0
    %1759 = vmatprep.subr.bf16.mxu0 0
    %1760 = vmatpush2.bf16.msra.mxu0 0
    %1761 = vmatprep.subr.bf16.mxu0 0
    %1762 = vmatpush2.bf16.msra.mxu0 0
    %1763 = vmatprep.subr.bf16.mxu0 0
    %1764 = vmatpush2.bf16.msra.mxu0 0
    %1765 = vmatprep.mubr.bf16.mxu0 0
    %1766 = vmatmul.mubr.bf16.gmra.mxu0 %v1660
    %v1767 = vpop.f32.mrf.mxu0
    %v1768 = vadd.f32 %v1683, %v1767
    %v1769 = vpop.f32.mrf.mxu0
    %v1770 = vpop.f32.mrf.mxu0
    %v1771 = vadd.f32 %v1683, %v1770
    %v1772 = vpop.f32.mrf.mxu0
    %1773 = vmatprep.mubr.bf16.mxu0 0
    %1774 = vmatmul.mubr.bf16.gmra.mxu0 %v1661
    %v1775 = vpop.f32.mrf.mxu0
    %v1776 = vadd.f32 %v1683, %v1775
    %v1777 = vpop.f32.mrf.mxu0
    %v1778 = vpop.f32.mrf.mxu0
    %v1779 = vadd.f32 %v1683, %v1778
    %v1780 = vpop.f32.mrf.mxu0
    %1781 = vdwg.mxu0
    %v1782 = vmax.f32 %v1768, 0.0
    %v1783 = vmax.f32 %v1771, 0.0
    %v1784 = vmax.f32 %v1776, 0.0
    %v1785 = vmax.f32 %v1779, 0.0
    %v1786 = vrot.slane %v1782, 4
    %v1787 = vmax.f32 %v1782, %v1786
    %v1788 = vrot.slane %v1787, 2
    %v1789 = vmax.f32 %v1787, %v1788
    %v1790 = vrot.slane %v1789, 1
    %v1791 = vmax.f32 %v1789, %v1790
    %v1792 = vrot.slane %v1783, 4
    %v1793 = vmax.f32 %v1783, %v1792
    %v1794 = vrot.slane %v1793, 2
    %v1795 = vmax.f32 %v1793, %v1794
    %v1796 = vrot.slane %v1795, 1
    %v1797 = vmax.f32 %v1795, %v1796
    %v1798 = vrot.slane %v1784, 4
    %v1799 = vmax.f32 %v1784, %v1798
    %v1800 = vrot.slane %v1799, 2
    %v1801 = vmax.f32 %v1799, %v1800
    %v1802 = vrot.slane %v1801, 1
    %v1803 = vmax.f32 %v1801, %v1802
    %v1804 = vrot.slane %v1785, 4
    %v1805 = vmax.f32 %v1785, %v1804
    %v1806 = vrot.slane %v1805, 2
    %v1807 = vmax.f32 %v1805, %v1806
    %v1808 = vrot.slane %v1807, 1
    %v1809 = vmax.f32 %v1807, %v1808
    %v1810 = vpack.c.bf16 %v1783, %v1782
    %v1811 = vpack.c.bf16 %v1785, %v1784
    %v1812 = vld [vmem:[#allocation8] sm:$0xf]
    %v1813 = vld [vmem:[#allocation8 + $0x4] sm:$0xf]
    %v1814 = vld [vmem:[#allocation8 + $0x8] sm:$0xf]
    %v1815 = vld [vmem:[#allocation8 + $0xc] sm:$0xf]
    %v1816 = vld [vmem:[#allocation8 + $0x10] sm:$0xf]
    %v1817 = vld [vmem:[#allocation8 + $0x14] sm:$0xf]
    %v1818 = vld [vmem:[#allocation8 + $0x18] sm:$0xf]
    %v1819 = vld [vmem:[#allocation8 + $0x1c] sm:$0xf]
    %v1820 = vld [vmem:[#allocation8 + $0x20] sm:$0xf]
    %v1821 = vld [vmem:[#allocation8 + $0x24] sm:$0xf]
    %v1822 = vld [vmem:[#allocation8 + $0x28] sm:$0xf]
    %v1823 = vld [vmem:[#allocation8 + $0x2c] sm:$0xf]
    %v1824 = vld [vmem:[#allocation8 + $0x30] sm:$0xf]
    %v1825 = vld [vmem:[#allocation8 + $0x34] sm:$0xf]
    %v1826 = vld [vmem:[#allocation8 + $0x38] sm:$0xf]
    %v1827 = vld [vmem:[#allocation8 + $0x3c] sm:$0xf]
    %v1828 = vld [vmem:[%s6] sm:$0x1]
    %v1830 = vlaneseq
    %v1831 = vshrl.u32 %v1830, 7
    %v1832 = vsub.s32 0, %v1831
    %v1833 = vrot.slane %v1828, %v1832
    %v1851 = vunpack.c.l.b16 %v1812
    %v1852 = vunpack.c.l.b16 %v1813
    %v1853 = vunpack.c.l.b16 %v1814
    %v1854 = vunpack.c.l.b16 %v1815
    %v1855 = vunpack.c.l.b16 %v1816
    %v1856 = vunpack.c.l.b16 %v1817
    %v1857 = vunpack.c.l.b16 %v1818
    %v1858 = vunpack.c.l.b16 %v1819
    %v1859 = vunpack.c.l.b16 %v1820
    %v1860 = vunpack.c.l.b16 %v1821
    %v1861 = vunpack.c.l.b16 %v1822
    %v1862 = vunpack.c.l.b16 %v1823
    %v1863 = vunpack.c.l.b16 %v1824
    %v1864 = vunpack.c.l.b16 %v1825
    %v1865 = vunpack.c.l.b16 %v1826
    %v1866 = vunpack.c.l.b16 %v1827
    %v1867 = vpack.c.b16 %v1852, %v1851
    %v1868 = vpack.c.b16 %v1854, %v1853
    %v1869 = vpack.c.b16 %v1856, %v1855
    %v1870 = vpack.c.b16 %v1858, %v1857
    %v1871 = vpack.c.b16 %v1860, %v1859
    %v1872 = vpack.c.b16 %v1862, %v1861
    %v1873 = vpack.c.b16 %v1864, %v1863
    %v1874 = vpack.c.b16 %v1866, %v1865
    %1883 = vmatprep.subr.bf16.mxu0 0
    %1884 = vmatpush1.bf16.msra.mxu0 %v1874
    %1885 = vmatprep.subr.bf16.mxu0 0
    %1886 = vmatpush1.bf16.msra.mxu0 %v1873
    %1887 = vmatprep.subr.bf16.mxu0 0
    %1888 = vmatpush1.bf16.msra.mxu0 %v1872
    %1889 = vmatprep.subr.bf16.mxu0 0
    %1890 = vmatpush1.bf16.msra.mxu0 %v1871
    %1891 = vmatprep.subr.bf16.mxu0 0
    %1892 = vmatpush1.bf16.msra.mxu0 %v1870
    %1893 = vmatprep.subr.bf16.mxu0 0
    %1894 = vmatpush1.bf16.msra.mxu0 %v1869
    %1895 = vmatprep.subr.bf16.mxu0 0
    %1896 = vmatpush1.bf16.msra.mxu0 %v1868
    %1897 = vmatprep.subr.bf16.mxu0 0
    %1898 = vmatpush1.bf16.msra.mxu0 %v1867
    %1899 = vmatprep.subr.bf16.mxu0 0
    %1900 = vmatpush2.bf16.msra.mxu0 0
    %1901 = vmatprep.subr.bf16.mxu0 0
    %1902 = vmatpush2.bf16.msra.mxu0 0
    %1903 = vmatprep.subr.bf16.mxu0 0
    %1904 = vmatpush2.bf16.msra.mxu0 0
    %1905 = vmatprep.subr.bf16.mxu0 0
    %1906 = vmatpush2.bf16.msra.mxu0 0
    %1907 = vmatprep.subr.bf16.mxu0 0
    %1908 = vmatpush2.bf16.msra.mxu0 0
    %1909 = vmatprep.subr.bf16.mxu0 0
    %1910 = vmatpush2.bf16.msra.mxu0 0
    %1911 = vmatprep.subr.bf16.mxu0 0
    %1912 = vmatpush2.bf16.msra.mxu0 0
    %1913 = vmatprep.subr.bf16.mxu0 0
    %1914 = vmatpush2.bf16.msra.mxu0 0
    %1915 = vmatprep.mubr.bf16.mxu0 0
    %1916 = vmatmul.mubr.bf16.gmra.mxu0 %v1810
    %v1917 = vpop.f32.mrf.mxu0
    %v1918 = vadd.f32 %v1833, %v1917
    %v1919 = vpop.f32.mrf.mxu0
    %v1920 = vpop.f32.mrf.mxu0
    %v1921 = vadd.f32 %v1833, %v1920
    %v1922 = vpop.f32.mrf.mxu0
    %1923 = vmatprep.mubr.bf16.mxu0 0
    %1924 = vmatmul.mubr.bf16.gmra.mxu0 %v1811
    %v1925 = vpop.f32.mrf.mxu0
    %v1926 = vadd.f32 %v1833, %v1925
    %v1927 = vpop.f32.mrf.mxu0
    %v1928 = vpop.f32.mrf.mxu0
    %v1929 = vadd.f32 %v1833, %v1928
    %v1930 = vpop.f32.mrf.mxu0
    %1931 = vdwg.mxu0
    %v1932 = vmax.f32 %v1918, 0.0
    %v1933 = vmax.f32 %v1921, 0.0
    %v1934 = vmax.f32 %v1926, 0.0
    %v1935 = vmax.f32 %v1929, 0.0
    %v1936 = vrot.slane %v1932, 4
    %v1937 = vmax.f32 %v1932, %v1936
    %v1938 = vrot.slane %v1937, 2
    %v1939 = vmax.f32 %v1937, %v1938
    %v1940 = vrot.slane %v1939, 1
    %v1941 = vmax.f32 %v1939, %v1940
    %v1942 = vrot.slane %v1933, 4
    %v1943 = vmax.f32 %v1933, %v1942
    %v1944 = vrot.slane %v1943, 2
    %v1945 = vmax.f32 %v1943, %v1944
    %v1946 = vrot.slane %v1945, 1
    %v1947 = vmax.f32 %v1945, %v1946
    %v1948 = vrot.slane %v1934, 4
    %v1949 = vmax.f32 %v1934, %v1948
    %v1950 = vrot.slane %v1949, 2
    %v1951 = vmax.f32 %v1949, %v1950
    %v1952 = vrot.slane %v1951, 1
    %v1953 = vmax.f32 %v1951, %v1952
    %v1954 = vrot.slane %v1935, 4
    %v1955 = vmax.f32 %v1935, %v1954
    %v1956 = vrot.slane %v1955, 2
    %v1957 = vmax.f32 %v1955, %v1956
    %v1958 = vrot.slane %v1957, 1
    %v1959 = vmax.f32 %v1957, %v1958
    %v1960 = vadd.f32 %v1641, %v1791
    %v1961 = vadd.f32 %v1647, %v1797
    %v1962 = vadd.f32 %v1653, %v1803
    %v1963 = vadd.f32 %v1659, %v1809
    %v1964 = vadd.f32 %v1960, %v1941
    %v1965 = vadd.f32 %v1961, %v1947
    %v1966 = vadd.f32 %v1962, %v1953
    %v1967 = vadd.f32 %v1963, %v1959
    %v1968 = vld [vmem:[%s7] sm:$0x1]
    %v1970 = vlaneseq
    %v1971 = vshrl.u32 %v1970, 7
    %v1972 = vsub.s32 0, %v1971
    %v1973 = vrot.slane %v1968, %v1972
    %v1975 = vmul.f32 %v1964, %v1973
    %v1976 = vmul.f32 %v1965, %v1973
    %v1977 = vmul.f32 %v1966, %v1973
    %v1978 = vmul.f32 %v1967, %v1973
    %v1983 = vrot.slane %v1976, 7
    %vm1984 = vcmask 1041409
    %v1985 = vsel %vm1984, %v1983, %v1975
    %v1986 = vrot.slane %v1977, 6
    %vm1987 = vcmask 1042434
    %v1988 = vsel %vm1987, %v1986, %v1985
    %v1989 = vrot.slane %v1978, 5
    %vm1990 = vcmask 1043459
    %v1991 = vsel %vm1990, %v1989, %v1988
    %vm1993 = vcmask 1043456
    %v1994 = vsel %vm1993, %v1991, 0.0
    %1995 = vadd.xlane.f32.xlu0 %v1994
    %v1996 = vpop.xlane.xlu0 %1995
    %v1997 = vld [vmem:[%s8] sm:$0x1]
    %v1999 = vlaneseq
    %v2000 = vshrl.u32 %v1999, 7
    %v2001 = vsub.s32 0, %v2000
    %v2002 = vrot.slane %v1997, %v2001
    %v2004 = vadd.f32 %v1996, %v2002
    %v2005 = vxor.u32 %v2004, 2147483648
    %v2006 = vmul.f32 %v2005, 1.442695
    %v2007 = vpow.pop %v2006
    %v2008 = vadd.f32 %v2007, 1.0
    %v2009 = vrcp.pop %v2008
    %v2010 = vmul.f32 1.0, %v2009
    %2011 = vst [vmem:[#allocation10] sm:$0xf] %v2010
    // Predicated region
    $region54: #{tpu_custom_call.1} parent=1 // pred_check
      _
    $region55: #{tpu_custom_call.1} parent=1 // pred_check_branch
      %2013 = sbr.rel (0) target = $region57
    $region56: #{tpu_custom_call.1} parent=1 // pred_region
      %s2015 = ssub.s32 64, 64
      %2016 = vsyncadd [#allocation4], %s2015
      %s2018 = sshll.u32 [#allocation10], 4
      %s2019 = int_to_ptr.vmem [resolvable:$true] %s2018
      %2021 = dma.vmem_to_hbm [thread:$0]  %s2019, 64, %s9, [#allocation4]
    $region57: #{tpu_custom_call.1} parent=1 // pred_fallthru
      _
    // Predicated region
    $region58: #{tpu_custom_call.1} parent=1 // pred_check
      _
    $region59: #{tpu_custom_call.1} parent=1 // pred_check_branch
      %2023 = sbr.rel (0) target = $region61
    $region60: #{tpu_custom_call.1} parent=1 // pred_region
      %2024 = dma.done [#allocation4], 64
    $region61: #{tpu_custom_call.1} parent=1 // pred_fallthru
      _
    %2025 = vsyncpa [#allocation3], 1
    %2026 = vsyncpa [#allocation6], 1
    %2027 = vsyncpa [#allocation9], 1
    %2028 = vsyncpa [#allocation4], 1

</llo_original>
